<compile_context>
chip_gen: v5e
topology: v5e:2x2
jax: 0.10.0
libtpu: 0.0.40
codegen_flags: <defaults>
</compile_context>

<pallas_src>
import functools

import jax
import jax.numpy as jnp
import numpy as np
from jax import lax
from jax.experimental import pallas as pl
from jax.experimental.pallas import tpu as pltpu

EPS = 1e-5
F32 = jnp.float32

N_UP = 6     # number of ConvLayerUp blocks
CH = 16      # channel width of the up layers (and the decoder input)
K = 3        # conv filter size


# ------------------------------ kernel helpers ------------------------------

def _conv_bn_relu(x3, w3, gamma, beta):
    """Conv1d(k=3,p=1) (bias dropped: exactly cancelled by train-mode BN) +
    BatchNorm1d (training-mode batch stats, biased variance, eps=1e-5) folded
    into one scale/shift, followed by ReLU.

    x3    : (3*Cin, N)   tap-stacked input, N = B*L (batches packed on lanes)
    w3    : (Cout, 3*Cin) packed conv weights
    gamma, beta : (Cout, 1)
    returns (Cout, N)
    """
    y = jnp.dot(w3, x3, preferred_element_type=F32)                # one MXU matmul
    n = float(x3.shape[1])                                         # B*L
    mean = jnp.sum(y, axis=1, keepdims=True) / n
    var = jnp.sum(y * y, axis=1, keepdims=True) / n - mean * mean  # one-pass, biased
    scale = lax.rsqrt(var + EPS) * gamma                           # (Cout, 1)
    shift = beta - mean * scale                                    # (Cout, 1)
    return jnp.maximum(y * scale + shift, 0.0)                     # ReLU


# --------------------------------- kernel -----------------------------------

def _decoder_kernel(x3_ref, wu_ref, gu_ref, beu_ref, wf_ref, gf_ref, bef_ref,
                    *rest, B, L0, merged):
    """Whole CNNDecoder forward; activations never leave VMEM/vregs.

    x3_ref : (48, B*L0)  first conv's tap stack (built in the wrapper)
    wu_ref : (6, 16, 48) packed up-layer conv weights
    gu_ref/beu_ref : (6, 16, 1) BN gamma / beta
    wf_ref : (Cf, 48), gf_ref/bef_ref : (Cf, 1) final layer params
    rest   : per-stage selection matrices (merged or prev/center/next), then o_ref
    o_ref  : (Cf, B * L0 * 2**6) lane-dense output slab
    """
    u_refs, o_ref = rest[:-1], rest[-1]

    x3 = x3_ref[...]
    L, ui = L0, 0
    for i in range(N_UP):                       # 6 ConvLayerUp blocks, fully unrolled
        y = _conv_bn_relu(x3, wu_ref[i], gu_ref[i], beu_ref[i])
        two_bl = 2 * B * L
        if merged[i]:
            # single (C, BL) @ (BL, 3*2BL) matmul; 128-aligned lane splits
            t = jnp.dot(y, u_refs[ui][...], preferred_element_type=F32)
            ui += 1
            taps = [t[:, k * two_bl:(k + 1) * two_bl] for k in range(3)]
        else:
            taps = [jnp.dot(y, u_refs[ui + k][...], preferred_element_type=F32)
                    for k in range(3)]
            ui += 3
        x3 = jnp.concatenate(taps, axis=0)      # (3*C, 2*B*L) tap stack for next conv
        L = 2 * L

    # final ConvLayer (16 -> feature_dim) + tanh; one lane-dense store
    y = jnp.tanh(_conv_bn_relu(x3, wf_ref[...], gf_ref[...], bef_ref[...]))
    o_ref[...] = y.astype(o_ref.dtype)


# ------------------------ host-side selection matrices ----------------------

def _upsample_tap_mats(B, L):
    """0/1 selection matrices (B*L, 2*B*L): y @ U_t is tap t of the next conv on
    the nearest-2x upsample of y, with zeros at every per-batch boundary column
    (== the next conv's zero padding).  Pure compile-time constants of (B, L)."""
    BL, twoL = B * L, 2 * L
    j = np.arange(BL, dtype=np.int64)[:, None]        # source column
    i = np.arange(2 * BL, dtype=np.int64)[None, :]    # destination column
    left = (i % twoL) == 0
    right = (i % twoL) == twoL - 1
    u_c = (i == 2 * j) | (i == 2 * j + 1)                         # up[i]   = y[i//2]
    u_prev = ((i == 2 * j + 1) | (i == 2 * j + 2)) & ~left        # up[i-1]
    u_next = ((i == 2 * j - 1) | (i == 2 * j)) & ~right           # up[i+1]
    return (u_prev.astype(np.float32), u_c.astype(np.float32),
            u_next.astype(np.float32))


# --------------------------------- wrapper -----------------------------------

def cnn_decoder_forward(x_ncl, packed):
    """x_ncl: (B, 16, L) PyTorch NCL layout.  Returns (B, feature_dim, 64*L)."""
    B, Cin, L0 = x_ncl.shape
    Cf = packed["w_f"].shape[0]
    Lout = L0 * (2 ** N_UP)
    assert Cin == CH and packed["w_up"].shape == (N_UP, CH, K * CH)

    # First conv's (48, B*L0) tap stack, built with plain XLA ops (tiny input).
    x_prev = jnp.pad(x_ncl, ((0, 0), (0, 0), (1, 0)))[:, :, :L0]   # x[l-1], zero pad
    x_next = jnp.pad(x_ncl, ((0, 0), (0, 0), (0, 1)))[:, :, 1:]    # x[l+1], zero pad

    def lanes(t):                                   # (B, Cin, L0) -> (Cin, B*L0)
        return jnp.transpose(t, (1, 0, 2)).reshape(Cin, B * L0)

    x3 = jnp.concatenate([lanes(x_prev), lanes(x_ncl), lanes(x_next)], axis=0)

    # Per-stage selection matrices: host-side constants, merged where the
    # resulting lane splits land on 128-aligned offsets.
    u_mats, merged = [], []
    L = L0
    for _ in range(N_UP):
        up_, uc_, un_ = _upsample_tap_mats(B, L)
        if (2 * B * L) % 128 == 0:
            u_mats.append(np.concatenate([up_, uc_, un_], axis=1))
            merged.append(True)
        else:
            u_mats.extend([up_, uc_, un_])
            merged.append(False)
        L *= 2

    inputs = (x3, packed["w_up"], packed["g_up"], packed["be_up"],
              packed["w_f"], packed["g_f"], packed["be_f"],
              *[jnp.asarray(u) for u in u_mats])

    # Advisory cost estimate (kernel is launch/latency dominated).
    flops = 2 * CH * (K * CH) * (B * L0)
    L = L0
    for i in range(N_UP):
        bl = B * L
        flops += 3 * (2 * CH * bl * (2 * bl))                        # selection matmuls
        cout = CH if i < N_UP - 1 else Cf
        flops += 2 * cout * (K * CH) * (2 * bl)                      # next conv
        L *= 2
    transcendentals = Cf * B * Lout + (N_UP + 1) * CH
    bytes_accessed = int(sum(int(np.prod(a.shape)) for a in inputs) * 4
                         + Cf * B * Lout * 4)

    kernel = functools.partial(_decoder_kernel, B=B, L0=L0, merged=tuple(merged))

    out2d = pl.pallas_call(
        kernel,
        out_shape=jax.ShapeDtypeStruct((Cf, B * Lout), F32),
        compiler_params=pltpu.CompilerParams(vmem_limit_bytes=32 * 1024 * 1024),
        cost_estimate=pl.CostEstimate(flops=int(flops),
                                      transcendentals=int(transcendentals),
                                      bytes_accessed=bytes_accessed),
    )(*inputs)

    # (Cf, B*Lout) lane-dense slab -> (B, Cf, Lout) NCL (4 KB XLA transpose).
    return jnp.transpose(out2d.reshape(Cf, B, Lout), (1, 0, 2))


# ---------------------------- parameter handling -----------------------------

def _init_conv_bn(key, cin, cout):
    k1, k2, k3, k4 = jax.random.split(key, 4)
    return dict(
        w=0.2 * jax.random.normal(k1, (cout, cin, K), F32),   # PyTorch Conv1d (O, I, K)
        b=0.1 * jax.random.normal(k2, (cout,), F32),          # reference-only (BN cancels it)
        gamma=1.0 + 0.1 * jax.random.normal(k3, (cout,), F32),
        beta=0.1 * jax.random.normal(k4, (cout,), F32),
    )


def init_params(key, feature_dim):
    keys = jax.random.split(key, N_UP + 1)
    up = [_init_conv_bn(keys[i], CH, CH) for i in range(N_UP)]   # conv6 .. conv1
    final = _init_conv_bn(keys[N_UP], CH, feature_dim)           # conv0
    return dict(up=up, final=final)


def pack_params(params):
    """One-time packing into the kernel layout.  The conv bias is intentionally
    not packed: the train-mode BN mean subtraction cancels it exactly."""
    def pack_w(w):                                 # (Cout, Cin, 3) -> (Cout, 3*Cin)
        co, ci, k = w.shape                        # column block t holds tap x[l-1+t]
        return jnp.transpose(w, (0, 2, 1)).reshape(co, k * ci)

    def col(v):                                    # (C,) -> (C, 1)
        return v.reshape(-1, 1)

    pf = params["final"]
    return dict(
        w_up=jnp.stack([pack_w(p["w"]) for p in params["up"]]),   # (6, 16, 48)
        g_up=jnp.stack([col(p["gamma"]) for p in params["up"]]),  # (6, 16, 1)
        be_up=jnp.stack([col(p["beta"]) for p in params["up"]]),
        w_f=pack_w(pf["w"]),                                      # (Cf, 48)
        g_f=col(pf["gamma"]), be_f=col(pf["beta"]),
    )


# ----------------------------- pure-JAX reference ----------------------------

def _ref_layer(x, p, upsample):
    y = lax.conv_general_dilated(
        x, p["w"], window_strides=(1,), padding=[(1, 1)],
        dimension_numbers=("NCH", "OIH", "NCH")) + p["b"][None, :, None]
    mean = y.mean(axis=(0, 2), keepdims=True)
    var = ((y - mean) ** 2).mean(axis=(0, 2), keepdims=True)
    y = (y - mean) * lax.rsqrt(var + EPS) * p["gamma"][None, :, None] + p["beta"][None, :, None]
    y = jnp.maximum(y, 0.0)
    if upsample:
        y = jnp.repeat(y, 2, axis=2)               # nearest, scale_factor=2
    return y


def reference_forward(x, params):
    for p in params["up"]:
        x = _ref_layer(x, p, upsample=True)
    return jnp.tanh(_ref_layer(x, params["final"], upsample=False))


# ------------------------------------ main -----------------------------------

if __name__ == "__main__":
    feature_dim, batch, seq_in = 4, 2, 2           # input (B, 16, L) -> output (B, 4, 64*L)
    key = jax.random.PRNGKey(0)
    params = init_params(key, feature_dim)
    packed = pack_params(params)
    x = jax.random.normal(jax.random.fold_in(key, 123), (batch, CH, seq_in), F32)

    fwd = jax.jit(cnn_decoder_forward)
    out = jax.block_until_ready(fwd(x, packed))
    assert out.shape == (batch, feature_dim, seq_in * 2 ** N_UP)

    ref = reference_forward(x, params)
    np.testing.assert_allclose(np.asarray(out), np.asarray(ref), rtol=2e-3, atol=2e-3)

    print("KERNEL_OK")
</pallas_src>

<mosaic_0001>
module attributes {stable_mosaic.version = 11 : i64} {
  func.func @_decoder_kernel(%arg0: memref<48x4xf32, #tpu.memory_space<vmem>>, %arg1: memref<6x16x48xf32, #tpu.memory_space<vmem>>, %arg2: memref<6x16x1xf32, #tpu.memory_space<vmem>>, %arg3: memref<6x16x1xf32, #tpu.memory_space<vmem>>, %arg4: memref<4x48xf32, #tpu.memory_space<vmem>>, %arg5: memref<4x1xf32, #tpu.memory_space<vmem>>, %arg6: memref<4x1xf32, #tpu.memory_space<vmem>>, %arg7: memref<4x8xf32, #tpu.memory_space<vmem>>, %arg8: memref<4x8xf32, #tpu.memory_space<vmem>>, %arg9: memref<4x8xf32, #tpu.memory_space<vmem>>, %arg10: memref<8x16xf32, #tpu.memory_space<vmem>>, %arg11: memref<8x16xf32, #tpu.memory_space<vmem>>, %arg12: memref<8x16xf32, #tpu.memory_space<vmem>>, %arg13: memref<16x32xf32, #tpu.memory_space<vmem>>, %arg14: memref<16x32xf32, #tpu.memory_space<vmem>>, %arg15: memref<16x32xf32, #tpu.memory_space<vmem>>, %arg16: memref<32x64xf32, #tpu.memory_space<vmem>>, %arg17: memref<32x64xf32, #tpu.memory_space<vmem>>, %arg18: memref<32x64xf32, #tpu.memory_space<vmem>>, %arg19: memref<64x384xf32, #tpu.memory_space<vmem>>, %arg20: memref<128x768xf32, #tpu.memory_space<vmem>>, %arg21: memref<4x256xf32, #tpu.memory_space<vmem>>) attributes {dimension_semantics = [], scalar_prefetch = 0 : i64, scratch_operands = 0 : i64, tpu.core_type = #tpu.core_type<tc>} {
    %c0 = arith.constant 0 : index
    %c0_0 = arith.constant 0 : index
    %0 = vector.load %arg0[%c0, %c0_0] : memref<48x4xf32, #tpu.memory_space<vmem>>, vector<48x4xf32>
    %c0_1 = arith.constant 0 : index
    %c0_2 = arith.constant 0 : index
    %c0_3 = arith.constant 0 : index
    %1 = vector.load %arg1[%c0_1, %c0_2, %c0_3] : memref<6x16x48xf32, #tpu.memory_space<vmem>>, vector<1x16x48xf32>
    %2 = vector.shape_cast %1 : vector<1x16x48xf32> to vector<16x48xf32>
    %c0_4 = arith.constant 0 : index
    %c0_5 = arith.constant 0 : index
    %c0_6 = arith.constant 0 : index
    %3 = vector.load %arg2[%c0_4, %c0_5, %c0_6] : memref<6x16x1xf32, #tpu.memory_space<vmem>>, vector<1x16x1xf32>
    %4 = vector.shape_cast %3 : vector<1x16x1xf32> to vector<16x1xf32>
    %c0_7 = arith.constant 0 : index
    %c0_8 = arith.constant 0 : index
    %c0_9 = arith.constant 0 : index
    %5 = vector.load %arg3[%c0_7, %c0_8, %c0_9] : memref<6x16x1xf32, #tpu.memory_space<vmem>>, vector<1x16x1xf32>
    %6 = vector.shape_cast %5 : vector<1x16x1xf32> to vector<16x1xf32>
    %cst = arith.constant dense<0.000000e+00> : vector<16x4xf32>
    %7 = tpu.matmul %2, %0, %cst {dimension_numbers = #tpu.dot_dimension_numbers<[1], [0], [0], [1], [0, 0, 1, 1], [], []>} : vector<16x48xf32>, vector<48x4xf32>, vector<16x4xf32> -> vector<16x4xf32>
    %cst_10 = arith.constant dense<0.000000e+00> : vector<16xf32>
    %8 = vector.multi_reduction <add>, %7, %cst_10 [1] : vector<16x4xf32> to vector<16xf32>
    %9 = vector.shape_cast %8 : vector<16xf32> to vector<16x1xf32>
    %cst_11 = arith.constant 4.000000e+00 : f32
    %10 = vector.broadcast %cst_11 : f32 to vector<16x1xf32>
    %11 = arith.divf %9, %10 : vector<16x1xf32>
    %12 = arith.mulf %7, %7 : vector<16x4xf32>
    %cst_12 = arith.constant dense<0.000000e+00> : vector<16xf32>
    %13 = vector.multi_reduction <add>, %12, %cst_12 [1] : vector<16x4xf32> to vector<16xf32>
    %14 = vector.shape_cast %13 : vector<16xf32> to vector<16x1xf32>
    %cst_13 = arith.constant 4.000000e+00 : f32
    %15 = vector.broadcast %cst_13 : f32 to vector<16x1xf32>
    %16 = arith.divf %14, %15 : vector<16x1xf32>
    %17 = arith.mulf %11, %11 : vector<16x1xf32>
    %18 = arith.subf %16, %17 : vector<16x1xf32>
    %cst_14 = arith.constant 9.99999974E-6 : f32
    %19 = vector.broadcast %cst_14 : f32 to vector<16x1xf32>
    %20 = arith.addf %18, %19 : vector<16x1xf32>
    %21 = math.rsqrt %20 : vector<16x1xf32>
    %22 = arith.mulf %21, %4 : vector<16x1xf32>
    %23 = arith.mulf %11, %22 : vector<16x1xf32>
    %24 = arith.subf %6, %23 : vector<16x1xf32>
    %25 = vector.broadcast %22 : vector<16x1xf32> to vector<16x4xf32>
    %26 = arith.mulf %7, %25 : vector<16x4xf32>
    %27 = vector.broadcast %24 : vector<16x1xf32> to vector<16x4xf32>
    %28 = arith.addf %26, %27 : vector<16x4xf32>
    %cst_15 = arith.constant 0.000000e+00 : f32
    %29 = vector.broadcast %cst_15 : f32 to vector<16x4xf32>
    %30 = arith.maximumf %28, %29 : vector<16x4xf32>
    %c0_16 = arith.constant 0 : index
    %c0_17 = arith.constant 0 : index
    %31 = vector.load %arg7[%c0_16, %c0_17] : memref<4x8xf32, #tpu.memory_space<vmem>>, vector<4x8xf32>
    %cst_18 = arith.constant dense<0.000000e+00> : vector<16x8xf32>
    %32 = tpu.matmul %30, %31, %cst_18 {dimension_numbers = #tpu.dot_dimension_numbers<[1], [0], [0], [1], [0, 0, 1, 1], [], []>} : vector<16x4xf32>, vector<4x8xf32>, vector<16x8xf32> -> vector<16x8xf32>
    %c0_19 = arith.constant 0 : index
    %c0_20 = arith.constant 0 : index
    %33 = vector.load %arg8[%c0_19, %c0_20] : memref<4x8xf32, #tpu.memory_space<vmem>>, vector<4x8xf32>
    %cst_21 = arith.constant dense<0.000000e+00> : vector<16x8xf32>
    %34 = tpu.matmul %30, %33, %cst_21 {dimension_numbers = #tpu.dot_dimension_numbers<[1], [0], [0], [1], [0, 0, 1, 1], [], []>} : vector<16x4xf32>, vector<4x8xf32>, vector<16x8xf32> -> vector<16x8xf32>
    %c0_22 = arith.constant 0 : index
    %c0_23 = arith.constant 0 : index
    %35 = vector.load %arg9[%c0_22, %c0_23] : memref<4x8xf32, #tpu.memory_space<vmem>>, vector<4x8xf32>
    %cst_24 = arith.constant dense<0.000000e+00> : vector<16x8xf32>
    %36 = tpu.matmul %30, %35, %cst_24 {dimension_numbers = #tpu.dot_dimension_numbers<[1], [0], [0], [1], [0, 0, 1, 1], [], []>} : vector<16x4xf32>, vector<4x8xf32>, vector<16x8xf32> -> vector<16x8xf32>
    %37 = tpu.concatenate %32, %34, %36 in 0 : vector<16x8xf32>, vector<16x8xf32>, vector<16x8xf32> -> vector<48x8xf32>
    %c1 = arith.constant 1 : index
    %c0_25 = arith.constant 0 : index
    %c0_26 = arith.constant 0 : index
    %38 = vector.load %arg1[%c1, %c0_25, %c0_26] : memref<6x16x48xf32, #tpu.memory_space<vmem>>, vector<1x16x48xf32>
    %39 = vector.shape_cast %38 : vector<1x16x48xf32> to vector<16x48xf32>
    %c1_27 = arith.constant 1 : index
    %c0_28 = arith.constant 0 : index
    %c0_29 = arith.constant 0 : index
    %40 = vector.load %arg2[%c1_27, %c0_28, %c0_29] : memref<6x16x1xf32, #tpu.memory_space<vmem>>, vector<1x16x1xf32>
    %41 = vector.shape_cast %40 : vector<1x16x1xf32> to vector<16x1xf32>
    %c1_30 = arith.constant 1 : index
    %c0_31 = arith.constant 0 : index
    %c0_32 = arith.constant 0 : index
    %42 = vector.load %arg3[%c1_30, %c0_31, %c0_32] : memref<6x16x1xf32, #tpu.memory_space<vmem>>, vector<1x16x1xf32>
    %43 = vector.shape_cast %42 : vector<1x16x1xf32> to vector<16x1xf32>
    %cst_33 = arith.constant dense<0.000000e+00> : vector<16x8xf32>
    %44 = tpu.matmul %39, %37, %cst_33 {dimension_numbers = #tpu.dot_dimension_numbers<[1], [0], [0], [1], [0, 0, 1, 1], [], []>} : vector<16x48xf32>, vector<48x8xf32>, vector<16x8xf32> -> vector<16x8xf32>
    %cst_34 = arith.constant dense<0.000000e+00> : vector<16xf32>
    %45 = vector.multi_reduction <add>, %44, %cst_34 [1] : vector<16x8xf32> to vector<16xf32>
    %46 = vector.shape_cast %45 : vector<16xf32> to vector<16x1xf32>
    %cst_35 = arith.constant 8.000000e+00 : f32
    %47 = vector.broadcast %cst_35 : f32 to vector<16x1xf32>
    %48 = arith.divf %46, %47 : vector<16x1xf32>
    %49 = arith.mulf %44, %44 : vector<16x8xf32>
    %cst_36 = arith.constant dense<0.000000e+00> : vector<16xf32>
    %50 = vector.multi_reduction <add>, %49, %cst_36 [1] : vector<16x8xf32> to vector<16xf32>
    %51 = vector.shape_cast %50 : vector<16xf32> to vector<16x1xf32>
    %cst_37 = arith.constant 8.000000e+00 : f32
    %52 = vector.broadcast %cst_37 : f32 to vector<16x1xf32>
    %53 = arith.divf %51, %52 : vector<16x1xf32>
    %54 = arith.mulf %48, %48 : vector<16x1xf32>
    %55 = arith.subf %53, %54 : vector<16x1xf32>
    %cst_38 = arith.constant 9.99999974E-6 : f32
    %56 = vector.broadcast %cst_38 : f32 to vector<16x1xf32>
    %57 = arith.addf %55, %56 : vector<16x1xf32>
    %58 = math.rsqrt %57 : vector<16x1xf32>
    %59 = arith.mulf %58, %41 : vector<16x1xf32>
    %60 = arith.mulf %48, %59 : vector<16x1xf32>
    %61 = arith.subf %43, %60 : vector<16x1xf32>
    %62 = vector.broadcast %59 : vector<16x1xf32> to vector<16x8xf32>
    %63 = arith.mulf %44, %62 : vector<16x8xf32>
    %64 = vector.broadcast %61 : vector<16x1xf32> to vector<16x8xf32>
    %65 = arith.addf %63, %64 : vector<16x8xf32>
    %cst_39 = arith.constant 0.000000e+00 : f32
    %66 = vector.broadcast %cst_39 : f32 to vector<16x8xf32>
    %67 = arith.maximumf %65, %66 : vector<16x8xf32>
    %c0_40 = arith.constant 0 : index
    %c0_41 = arith.constant 0 : index
    %68 = vector.load %arg10[%c0_40, %c0_41] : memref<8x16xf32, #tpu.memory_space<vmem>>, vector<8x16xf32>
    %cst_42 = arith.constant dense<0.000000e+00> : vector<16x16xf32>
    %69 = tpu.matmul %67, %68, %cst_42 {dimension_numbers = #tpu.dot_dimension_numbers<[1], [0], [0], [1], [0, 0, 1, 1], [], []>} : vector<16x8xf32>, vector<8x16xf32>, vector<16x16xf32> -> vector<16x16xf32>
    %c0_43 = arith.constant 0 : index
    %c0_44 = arith.constant 0 : index
    %70 = vector.load %arg11[%c0_43, %c0_44] : memref<8x16xf32, #tpu.memory_space<vmem>>, vector<8x16xf32>
    %cst_45 = arith.constant dense<0.000000e+00> : vector<16x16xf32>
    %71 = tpu.matmul %67, %70, %cst_45 {dimension_numbers = #tpu.dot_dimension_numbers<[1], [0], [0], [1], [0, 0, 1, 1], [], []>} : vector<16x8xf32>, vector<8x16xf32>, vector<16x16xf32> -> vector<16x16xf32>
    %c0_46 = arith.constant 0 : index
    %c0_47 = arith.constant 0 : index
    %72 = vector.load %arg12[%c0_46, %c0_47] : memref<8x16xf32, #tpu.memory_space<vmem>>, vector<8x16xf32>
    %cst_48 = arith.constant dense<0.000000e+00> : vector<16x16xf32>
    %73 = tpu.matmul %67, %72, %cst_48 {dimension_numbers = #tpu.dot_dimension_numbers<[1], [0], [0], [1], [0, 0, 1, 1], [], []>} : vector<16x8xf32>, vector<8x16xf32>, vector<16x16xf32> -> vector<16x16xf32>
    %74 = tpu.concatenate %69, %71, %73 in 0 : vector<16x16xf32>, vector<16x16xf32>, vector<16x16xf32> -> vector<48x16xf32>
    %c2 = arith.constant 2 : index
    %c0_49 = arith.constant 0 : index
    %c0_50 = arith.constant 0 : index
    %75 = vector.load %arg1[%c2, %c0_49, %c0_50] : memref<6x16x48xf32, #tpu.memory_space<vmem>>, vector<1x16x48xf32>
    %76 = vector.shape_cast %75 : vector<1x16x48xf32> to vector<16x48xf32>
    %c2_51 = arith.constant 2 : index
    %c0_52 = arith.constant 0 : index
    %c0_53 = arith.constant 0 : index
    %77 = vector.load %arg2[%c2_51, %c0_52, %c0_53] : memref<6x16x1xf32, #tpu.memory_space<vmem>>, vector<1x16x1xf32>
    %78 = vector.shape_cast %77 : vector<1x16x1xf32> to vector<16x1xf32>
    %c2_54 = arith.constant 2 : index
    %c0_55 = arith.constant 0 : index
    %c0_56 = arith.constant 0 : index
    %79 = vector.load %arg3[%c2_54, %c0_55, %c0_56] : memref<6x16x1xf32, #tpu.memory_space<vmem>>, vector<1x16x1xf32>
    %80 = vector.shape_cast %79 : vector<1x16x1xf32> to vector<16x1xf32>
    %cst_57 = arith.constant dense<0.000000e+00> : vector<16x16xf32>
    %81 = tpu.matmul %76, %74, %cst_57 {dimension_numbers = #tpu.dot_dimension_numbers<[1], [0], [0], [1], [0, 0, 1, 1], [], []>} : vector<16x48xf32>, vector<48x16xf32>, vector<16x16xf32> -> vector<16x16xf32>
    %cst_58 = arith.constant dense<0.000000e+00> : vector<16xf32>
    %82 = vector.multi_reduction <add>, %81, %cst_58 [1] : vector<16x16xf32> to vector<16xf32>
    %83 = vector.shape_cast %82 : vector<16xf32> to vector<16x1xf32>
    %cst_59 = arith.constant 1.600000e+01 : f32
    %84 = vector.broadcast %cst_59 : f32 to vector<16x1xf32>
    %85 = arith.divf %83, %84 : vector<16x1xf32>
    %86 = arith.mulf %81, %81 : vector<16x16xf32>
    %cst_60 = arith.constant dense<0.000000e+00> : vector<16xf32>
    %87 = vector.multi_reduction <add>, %86, %cst_60 [1] : vector<16x16xf32> to vector<16xf32>
    %88 = vector.shape_cast %87 : vector<16xf32> to vector<16x1xf32>
    %cst_61 = arith.constant 1.600000e+01 : f32
    %89 = vector.broadcast %cst_61 : f32 to vector<16x1xf32>
    %90 = arith.divf %88, %89 : vector<16x1xf32>
    %91 = arith.mulf %85, %85 : vector<16x1xf32>
    %92 = arith.subf %90, %91 : vector<16x1xf32>
    %cst_62 = arith.constant 9.99999974E-6 : f32
    %93 = vector.broadcast %cst_62 : f32 to vector<16x1xf32>
    %94 = arith.addf %92, %93 : vector<16x1xf32>
    %95 = math.rsqrt %94 : vector<16x1xf32>
    %96 = arith.mulf %95, %78 : vector<16x1xf32>
    %97 = arith.mulf %85, %96 : vector<16x1xf32>
    %98 = arith.subf %80, %97 : vector<16x1xf32>
    %99 = vector.broadcast %96 : vector<16x1xf32> to vector<16x16xf32>
    %100 = arith.mulf %81, %99 : vector<16x16xf32>
    %101 = vector.broadcast %98 : vector<16x1xf32> to vector<16x16xf32>
    %102 = arith.addf %100, %101 : vector<16x16xf32>
    %cst_63 = arith.constant 0.000000e+00 : f32
    %103 = vector.broadcast %cst_63 : f32 to vector<16x16xf32>
    %104 = arith.maximumf %102, %103 : vector<16x16xf32>
    %c0_64 = arith.constant 0 : index
    %c0_65 = arith.constant 0 : index
    %105 = vector.load %arg13[%c0_64, %c0_65] : memref<16x32xf32, #tpu.memory_space<vmem>>, vector<16x32xf32>
    %cst_66 = arith.constant dense<0.000000e+00> : vector<16x32xf32>
    %106 = tpu.matmul %104, %105, %cst_66 {dimension_numbers = #tpu.dot_dimension_numbers<[1], [0], [0], [1], [0, 0, 1, 1], [], []>} : vector<16x16xf32>, vector<16x32xf32>, vector<16x32xf32> -> vector<16x32xf32>
    %c0_67 = arith.constant 0 : index
    %c0_68 = arith.constant 0 : index
    %107 = vector.load %arg14[%c0_67, %c0_68] : memref<16x32xf32, #tpu.memory_space<vmem>>, vector<16x32xf32>
    %cst_69 = arith.constant dense<0.000000e+00> : vector<16x32xf32>
    %108 = tpu.matmul %104, %107, %cst_69 {dimension_numbers = #tpu.dot_dimension_numbers<[1], [0], [0], [1], [0, 0, 1, 1], [], []>} : vector<16x16xf32>, vector<16x32xf32>, vector<16x32xf32> -> vector<16x32xf32>
    %c0_70 = arith.constant 0 : index
    %c0_71 = arith.constant 0 : index
    %109 = vector.load %arg15[%c0_70, %c0_71] : memref<16x32xf32, #tpu.memory_space<vmem>>, vector<16x32xf32>
    %cst_72 = arith.constant dense<0.000000e+00> : vector<16x32xf32>
    %110 = tpu.matmul %104, %109, %cst_72 {dimension_numbers = #tpu.dot_dimension_numbers<[1], [0], [0], [1], [0, 0, 1, 1], [], []>} : vector<16x16xf32>, vector<16x32xf32>, vector<16x32xf32> -> vector<16x32xf32>
    %111 = tpu.concatenate %106, %108, %110 in 0 : vector<16x32xf32>, vector<16x32xf32>, vector<16x32xf32> -> vector<48x32xf32>
    %c3 = arith.constant 3 : index
    %c0_73 = arith.constant 0 : index
    %c0_74 = arith.constant 0 : index
    %112 = vector.load %arg1[%c3, %c0_73, %c0_74] : memref<6x16x48xf32, #tpu.memory_space<vmem>>, vector<1x16x48xf32>
    %113 = vector.shape_cast %112 : vector<1x16x48xf32> to vector<16x48xf32>
    %c3_75 = arith.constant 3 : index
    %c0_76 = arith.constant 0 : index
    %c0_77 = arith.constant 0 : index
    %114 = vector.load %arg2[%c3_75, %c0_76, %c0_77] : memref<6x16x1xf32, #tpu.memory_space<vmem>>, vector<1x16x1xf32>
    %115 = vector.shape_cast %114 : vector<1x16x1xf32> to vector<16x1xf32>
    %c3_78 = arith.constant 3 : index
    %c0_79 = arith.constant 0 : index
    %c0_80 = arith.constant 0 : index
    %116 = vector.load %arg3[%c3_78, %c0_79, %c0_80] : memref<6x16x1xf32, #tpu.memory_space<vmem>>, vector<1x16x1xf32>
    %117 = vector.shape_cast %116 : vector<1x16x1xf32> to vector<16x1xf32>
    %cst_81 = arith.constant dense<0.000000e+00> : vector<16x32xf32>
    %118 = tpu.matmul %113, %111, %cst_81 {dimension_numbers = #tpu.dot_dimension_numbers<[1], [0], [0], [1], [0, 0, 1, 1], [], []>} : vector<16x48xf32>, vector<48x32xf32>, vector<16x32xf32> -> vector<16x32xf32>
    %cst_82 = arith.constant dense<0.000000e+00> : vector<16xf32>
    %119 = vector.multi_reduction <add>, %118, %cst_82 [1] : vector<16x32xf32> to vector<16xf32>
    %120 = vector.shape_cast %119 : vector<16xf32> to vector<16x1xf32>
    %cst_83 = arith.constant 3.200000e+01 : f32
    %121 = vector.broadcast %cst_83 : f32 to vector<16x1xf32>
    %122 = arith.divf %120, %121 : vector<16x1xf32>
    %123 = arith.mulf %118, %118 : vector<16x32xf32>
    %cst_84 = arith.constant dense<0.000000e+00> : vector<16xf32>
    %124 = vector.multi_reduction <add>, %123, %cst_84 [1] : vector<16x32xf32> to vector<16xf32>
    %125 = vector.shape_cast %124 : vector<16xf32> to vector<16x1xf32>
    %cst_85 = arith.constant 3.200000e+01 : f32
    %126 = vector.broadcast %cst_85 : f32 to vector<16x1xf32>
    %127 = arith.divf %125, %126 : vector<16x1xf32>
    %128 = arith.mulf %122, %122 : vector<16x1xf32>
    %129 = arith.subf %127, %128 : vector<16x1xf32>
    %cst_86 = arith.constant 9.99999974E-6 : f32
    %130 = vector.broadcast %cst_86 : f32 to vector<16x1xf32>
    %131 = arith.addf %129, %130 : vector<16x1xf32>
    %132 = math.rsqrt %131 : vector<16x1xf32>
    %133 = arith.mulf %132, %115 : vector<16x1xf32>
    %134 = arith.mulf %122, %133 : vector<16x1xf32>
    %135 = arith.subf %117, %134 : vector<16x1xf32>
    %136 = vector.broadcast %133 : vector<16x1xf32> to vector<16x32xf32>
    %137 = arith.mulf %118, %136 : vector<16x32xf32>
    %138 = vector.broadcast %135 : vector<16x1xf32> to vector<16x32xf32>
    %139 = arith.addf %137, %138 : vector<16x32xf32>
    %cst_87 = arith.constant 0.000000e+00 : f32
    %140 = vector.broadcast %cst_87 : f32 to vector<16x32xf32>
    %141 = arith.maximumf %139, %140 : vector<16x32xf32>
    %c0_88 = arith.constant 0 : index
    %c0_89 = arith.constant 0 : index
    %142 = vector.load %arg16[%c0_88, %c0_89] : memref<32x64xf32, #tpu.memory_space<vmem>>, vector<32x64xf32>
    %cst_90 = arith.constant dense<0.000000e+00> : vector<16x64xf32>
    %143 = tpu.matmul %141, %142, %cst_90 {dimension_numbers = #tpu.dot_dimension_numbers<[1], [0], [0], [1], [0, 0, 1, 1], [], []>} : vector<16x32xf32>, vector<32x64xf32>, vector<16x64xf32> -> vector<16x64xf32>
    %c0_91 = arith.constant 0 : index
    %c0_92 = arith.constant 0 : index
    %144 = vector.load %arg17[%c0_91, %c0_92] : memref<32x64xf32, #tpu.memory_space<vmem>>, vector<32x64xf32>
    %cst_93 = arith.constant dense<0.000000e+00> : vector<16x64xf32>
    %145 = tpu.matmul %141, %144, %cst_93 {dimension_numbers = #tpu.dot_dimension_numbers<[1], [0], [0], [1], [0, 0, 1, 1], [], []>} : vector<16x32xf32>, vector<32x64xf32>, vector<16x64xf32> -> vector<16x64xf32>
    %c0_94 = arith.constant 0 : index
    %c0_95 = arith.constant 0 : index
    %146 = vector.load %arg18[%c0_94, %c0_95] : memref<32x64xf32, #tpu.memory_space<vmem>>, vector<32x64xf32>
    %cst_96 = arith.constant dense<0.000000e+00> : vector<16x64xf32>
    %147 = tpu.matmul %141, %146, %cst_96 {dimension_numbers = #tpu.dot_dimension_numbers<[1], [0], [0], [1], [0, 0, 1, 1], [], []>} : vector<16x32xf32>, vector<32x64xf32>, vector<16x64xf32> -> vector<16x64xf32>
    %148 = tpu.concatenate %143, %145, %147 in 0 : vector<16x64xf32>, vector<16x64xf32>, vector<16x64xf32> -> vector<48x64xf32>
    %c4 = arith.constant 4 : index
    %c0_97 = arith.constant 0 : index
    %c0_98 = arith.constant 0 : index
    %149 = vector.load %arg1[%c4, %c0_97, %c0_98] : memref<6x16x48xf32, #tpu.memory_space<vmem>>, vector<1x16x48xf32>
    %150 = vector.shape_cast %149 : vector<1x16x48xf32> to vector<16x48xf32>
    %c4_99 = arith.constant 4 : index
    %c0_100 = arith.constant 0 : index
    %c0_101 = arith.constant 0 : index
    %151 = vector.load %arg2[%c4_99, %c0_100, %c0_101] : memref<6x16x1xf32, #tpu.memory_space<vmem>>, vector<1x16x1xf32>
    %152 = vector.shape_cast %151 : vector<1x16x1xf32> to vector<16x1xf32>
    %c4_102 = arith.constant 4 : index
    %c0_103 = arith.constant 0 : index
    %c0_104 = arith.constant 0 : index
    %153 = vector.load %arg3[%c4_102, %c0_103, %c0_104] : memref<6x16x1xf32, #tpu.memory_space<vmem>>, vector<1x16x1xf32>
    %154 = vector.shape_cast %153 : vector<1x16x1xf32> to vector<16x1xf32>
    %cst_105 = arith.constant dense<0.000000e+00> : vector<16x64xf32>
    %155 = tpu.matmul %150, %148, %cst_105 {dimension_numbers = #tpu.dot_dimension_numbers<[1], [0], [0], [1], [0, 0, 1, 1], [], []>} : vector<16x48xf32>, vector<48x64xf32>, vector<16x64xf32> -> vector<16x64xf32>
    %cst_106 = arith.constant dense<0.000000e+00> : vector<16xf32>
    %156 = vector.multi_reduction <add>, %155, %cst_106 [1] : vector<16x64xf32> to vector<16xf32>
    %157 = vector.shape_cast %156 : vector<16xf32> to vector<16x1xf32>
    %cst_107 = arith.constant 6.400000e+01 : f32
    %158 = vector.broadcast %cst_107 : f32 to vector<16x1xf32>
    %159 = arith.divf %157, %158 : vector<16x1xf32>
    %160 = arith.mulf %155, %155 : vector<16x64xf32>
    %cst_108 = arith.constant dense<0.000000e+00> : vector<16xf32>
    %161 = vector.multi_reduction <add>, %160, %cst_108 [1] : vector<16x64xf32> to vector<16xf32>
    %162 = vector.shape_cast %161 : vector<16xf32> to vector<16x1xf32>
    %cst_109 = arith.constant 6.400000e+01 : f32
    %163 = vector.broadcast %cst_109 : f32 to vector<16x1xf32>
    %164 = arith.divf %162, %163 : vector<16x1xf32>
    %165 = arith.mulf %159, %159 : vector<16x1xf32>
    %166 = arith.subf %164, %165 : vector<16x1xf32>
    %cst_110 = arith.constant 9.99999974E-6 : f32
    %167 = vector.broadcast %cst_110 : f32 to vector<16x1xf32>
    %168 = arith.addf %166, %167 : vector<16x1xf32>
    %169 = math.rsqrt %168 : vector<16x1xf32>
    %170 = arith.mulf %169, %152 : vector<16x1xf32>
    %171 = arith.mulf %159, %170 : vector<16x1xf32>
    %172 = arith.subf %154, %171 : vector<16x1xf32>
    %173 = vector.broadcast %170 : vector<16x1xf32> to vector<16x64xf32>
    %174 = arith.mulf %155, %173 : vector<16x64xf32>
    %175 = vector.broadcast %172 : vector<16x1xf32> to vector<16x64xf32>
    %176 = arith.addf %174, %175 : vector<16x64xf32>
    %cst_111 = arith.constant 0.000000e+00 : f32
    %177 = vector.broadcast %cst_111 : f32 to vector<16x64xf32>
    %178 = arith.maximumf %176, %177 : vector<16x64xf32>
    %c0_112 = arith.constant 0 : index
    %c0_113 = arith.constant 0 : index
    %179 = vector.load %arg19[%c0_112, %c0_113] : memref<64x384xf32, #tpu.memory_space<vmem>>, vector<64x384xf32>
    %cst_114 = arith.constant dense<0.000000e+00> : vector<16x384xf32>
    %180 = tpu.matmul %178, %179, %cst_114 {dimension_numbers = #tpu.dot_dimension_numbers<[1], [0], [0], [1], [0, 0, 1, 1], [], []>} : vector<16x64xf32>, vector<64x384xf32>, vector<16x384xf32> -> vector<16x384xf32>
    %181 = vector.extract_strided_slice %180 {offsets = [0, 0], sizes = [16, 128], strides = [1, 1]} : vector<16x384xf32> to vector<16x128xf32>
    %182 = vector.extract_strided_slice %180 {offsets = [0, 128], sizes = [16, 128], strides = [1, 1]} : vector<16x384xf32> to vector<16x128xf32>
    %183 = vector.extract_strided_slice %180 {offsets = [0, 256], sizes = [16, 128], strides = [1, 1]} : vector<16x384xf32> to vector<16x128xf32>
    %184 = tpu.concatenate %181, %182, %183 in 0 : vector<16x128xf32>, vector<16x128xf32>, vector<16x128xf32> -> vector<48x128xf32>
    %c5 = arith.constant 5 : index
    %c0_115 = arith.constant 0 : index
    %c0_116 = arith.constant 0 : index
    %185 = vector.load %arg1[%c5, %c0_115, %c0_116] : memref<6x16x48xf32, #tpu.memory_space<vmem>>, vector<1x16x48xf32>
    %186 = vector.shape_cast %185 : vector<1x16x48xf32> to vector<16x48xf32>
    %c5_117 = arith.constant 5 : index
    %c0_118 = arith.constant 0 : index
    %c0_119 = arith.constant 0 : index
    %187 = vector.load %arg2[%c5_117, %c0_118, %c0_119] : memref<6x16x1xf32, #tpu.memory_space<vmem>>, vector<1x16x1xf32>
    %188 = vector.shape_cast %187 : vector<1x16x1xf32> to vector<16x1xf32>
    %c5_120 = arith.constant 5 : index
    %c0_121 = arith.constant 0 : index
    %c0_122 = arith.constant 0 : index
    %189 = vector.load %arg3[%c5_120, %c0_121, %c0_122] : memref<6x16x1xf32, #tpu.memory_space<vmem>>, vector<1x16x1xf32>
    %190 = vector.shape_cast %189 : vector<1x16x1xf32> to vector<16x1xf32>
    %cst_123 = arith.constant dense<0.000000e+00> : vector<16x128xf32>
    %191 = tpu.matmul %186, %184, %cst_123 {dimension_numbers = #tpu.dot_dimension_numbers<[1], [0], [0], [1], [0, 0, 1, 1], [], []>} : vector<16x48xf32>, vector<48x128xf32>, vector<16x128xf32> -> vector<16x128xf32>
    %cst_124 = arith.constant dense<0.000000e+00> : vector<16xf32>
    %192 = vector.multi_reduction <add>, %191, %cst_124 [1] : vector<16x128xf32> to vector<16xf32>
    %193 = vector.shape_cast %192 : vector<16xf32> to vector<16x1xf32>
    %cst_125 = arith.constant 1.280000e+02 : f32
    %194 = vector.broadcast %cst_125 : f32 to vector<16x1xf32>
    %195 = arith.divf %193, %194 : vector<16x1xf32>
    %196 = arith.mulf %191, %191 : vector<16x128xf32>
    %cst_126 = arith.constant dense<0.000000e+00> : vector<16xf32>
    %197 = vector.multi_reduction <add>, %196, %cst_126 [1] : vector<16x128xf32> to vector<16xf32>
    %198 = vector.shape_cast %197 : vector<16xf32> to vector<16x1xf32>
    %cst_127 = arith.constant 1.280000e+02 : f32
    %199 = vector.broadcast %cst_127 : f32 to vector<16x1xf32>
    %200 = arith.divf %198, %199 : vector<16x1xf32>
    %201 = arith.mulf %195, %195 : vector<16x1xf32>
    %202 = arith.subf %200, %201 : vector<16x1xf32>
    %cst_128 = arith.constant 9.99999974E-6 : f32
    %203 = vector.broadcast %cst_128 : f32 to vector<16x1xf32>
    %204 = arith.addf %202, %203 : vector<16x1xf32>
    %205 = math.rsqrt %204 : vector<16x1xf32>
    %206 = arith.mulf %205, %188 : vector<16x1xf32>
    %207 = arith.mulf %195, %206 : vector<16x1xf32>
    %208 = arith.subf %190, %207 : vector<16x1xf32>
    %209 = vector.broadcast %206 : vector<16x1xf32> to vector<16x128xf32>
    %210 = arith.mulf %191, %209 : vector<16x128xf32>
    %211 = vector.broadcast %208 : vector<16x1xf32> to vector<16x128xf32>
    %212 = arith.addf %210, %211 : vector<16x128xf32>
    %cst_129 = arith.constant 0.000000e+00 : f32
    %213 = vector.broadcast %cst_129 : f32 to vector<16x128xf32>
    %214 = arith.maximumf %212, %213 : vector<16x128xf32>
    %c0_130 = arith.constant 0 : index
    %c0_131 = arith.constant 0 : index
    %215 = vector.load %arg20[%c0_130, %c0_131] : memref<128x768xf32, #tpu.memory_space<vmem>>, vector<128x768xf32>
    %cst_132 = arith.constant dense<0.000000e+00> : vector<16x768xf32>
    %216 = tpu.matmul %214, %215, %cst_132 {dimension_numbers = #tpu.dot_dimension_numbers<[1], [0], [0], [1], [0, 0, 1, 1], [], []>} : vector<16x128xf32>, vector<128x768xf32>, vector<16x768xf32> -> vector<16x768xf32>
    %217 = vector.extract_strided_slice %216 {offsets = [0, 0], sizes = [16, 256], strides = [1, 1]} : vector<16x768xf32> to vector<16x256xf32>
    %218 = vector.extract_strided_slice %216 {offsets = [0, 256], sizes = [16, 256], strides = [1, 1]} : vector<16x768xf32> to vector<16x256xf32>
    %219 = vector.extract_strided_slice %216 {offsets = [0, 512], sizes = [16, 256], strides = [1, 1]} : vector<16x768xf32> to vector<16x256xf32>
    %220 = tpu.concatenate %217, %218, %219 in 0 : vector<16x256xf32>, vector<16x256xf32>, vector<16x256xf32> -> vector<48x256xf32>
    %c0_133 = arith.constant 0 : index
    %c0_134 = arith.constant 0 : index
    %221 = vector.load %arg4[%c0_133, %c0_134] : memref<4x48xf32, #tpu.memory_space<vmem>>, vector<4x48xf32>
    %c0_135 = arith.constant 0 : index
    %c0_136 = arith.constant 0 : index
    %222 = vector.load %arg5[%c0_135, %c0_136] : memref<4x1xf32, #tpu.memory_space<vmem>>, vector<4x1xf32>
    %c0_137 = arith.constant 0 : index
    %c0_138 = arith.constant 0 : index
    %223 = vector.load %arg6[%c0_137, %c0_138] : memref<4x1xf32, #tpu.memory_space<vmem>>, vector<4x1xf32>
    %cst_139 = arith.constant dense<0.000000e+00> : vector<4x256xf32>
    %224 = tpu.matmul %221, %220, %cst_139 {dimension_numbers = #tpu.dot_dimension_numbers<[1], [0], [0], [1], [0, 0, 1, 1], [], []>} : vector<4x48xf32>, vector<48x256xf32>, vector<4x256xf32> -> vector<4x256xf32>
    %cst_140 = arith.constant dense<0.000000e+00> : vector<4xf32>
    %225 = vector.multi_reduction <add>, %224, %cst_140 [1] : vector<4x256xf32> to vector<4xf32>
    %226 = vector.shape_cast %225 : vector<4xf32> to vector<4x1xf32>
    %cst_141 = arith.constant 2.560000e+02 : f32
    %227 = vector.broadcast %cst_141 : f32 to vector<4x1xf32>
    %228 = arith.divf %226, %227 : vector<4x1xf32>
    %229 = arith.mulf %224, %224 : vector<4x256xf32>
    %cst_142 = arith.constant dense<0.000000e+00> : vector<4xf32>
    %230 = vector.multi_reduction <add>, %229, %cst_142 [1] : vector<4x256xf32> to vector<4xf32>
    %231 = vector.shape_cast %230 : vector<4xf32> to vector<4x1xf32>
    %cst_143 = arith.constant 2.560000e+02 : f32
    %232 = vector.broadcast %cst_143 : f32 to vector<4x1xf32>
    %233 = arith.divf %231, %232 : vector<4x1xf32>
    %234 = arith.mulf %228, %228 : vector<4x1xf32>
    %235 = arith.subf %233, %234 : vector<4x1xf32>
    %cst_144 = arith.constant 9.99999974E-6 : f32
    %236 = vector.broadcast %cst_144 : f32 to vector<4x1xf32>
    %237 = arith.addf %235, %236 : vector<4x1xf32>
    %238 = math.rsqrt %237 : vector<4x1xf32>
    %239 = arith.mulf %238, %222 : vector<4x1xf32>
    %240 = arith.mulf %228, %239 : vector<4x1xf32>
    %241 = arith.subf %223, %240 : vector<4x1xf32>
    %242 = vector.broadcast %239 : vector<4x1xf32> to vector<4x256xf32>
    %243 = arith.mulf %224, %242 : vector<4x256xf32>
    %244 = vector.broadcast %241 : vector<4x1xf32> to vector<4x256xf32>
    %245 = arith.addf %243, %244 : vector<4x256xf32>
    %cst_145 = arith.constant 0.000000e+00 : f32
    %246 = vector.broadcast %cst_145 : f32 to vector<4x256xf32>
    %247 = arith.maximumf %245, %246 : vector<4x256xf32>
    %248 = math.tanh %247 : vector<4x256xf32>
    %c0_146 = arith.constant 0 : index
    %c0_147 = arith.constant 0 : index
    %249 = vector.load %arg21[%c0_146, %c0_147] : memref<4x256xf32, #tpu.memory_space<vmem>>, vector<4x256xf32>
    tpu.vector_store %arg21[%c0_146, %c0_147], %248 {strides = array<i32>} : memref<4x256xf32, #tpu.memory_space<vmem>>, vector<4x256xf32>,
    return
  }
}

</mosaic_0001>

<llo_original>
// kernel: cnn_decoder_forward.1
$region0: #{cnn_decoder_forward.1}
  #allocation0 [shape = 'u32[]', space=smem, size = 0x4, offset = 0x4, fixed_abs, tag = 'smem constant byte address 0x4 - core index']
  #allocation1 [shape = 'u32[72,128]{1,0:T(1,128)}', space=vmem, size = 0x9000, scoped, tag = 'internal scratch']
  %s0 = inlined_call_operand.vmem [shape: f32[48,4], index: 0, kind: input, shape index: {}]
  %s1 = inlined_call_operand.vmem [shape: f32[6,16,48], index: 1, kind: input, shape index: {}]
  %s2 = inlined_call_operand.vmem [shape: f32[6,16,1], index: 2, kind: input, shape index: {}]
  %s3 = inlined_call_operand.vmem [shape: f32[6,16,1], index: 3, kind: input, shape index: {}]
  %s4 = inlined_call_operand.vmem [shape: f32[4,48], index: 4, kind: input, shape index: {}]
  %s5 = inlined_call_operand.vmem [shape: f32[4,1], index: 5, kind: input, shape index: {}]
  %s6 = inlined_call_operand.vmem [shape: f32[4,1], index: 6, kind: input, shape index: {}]
  %s7 = inlined_call_operand.hbm [shape: f32[4,8], index: 7, kind: input, shape index: {}]
  %s8 = inlined_call_operand.hbm [shape: f32[4,8], index: 8, kind: input, shape index: {}]
  %s9 = inlined_call_operand.hbm [shape: f32[4,8], index: 9, kind: input, shape index: {}]
  %s10 = inlined_call_operand.hbm [shape: f32[8,16], index: 10, kind: input, shape index: {}]
  %s11 = inlined_call_operand.hbm [shape: f32[8,16], index: 11, kind: input, shape index: {}]
  %s12 = inlined_call_operand.vmem [shape: f32[8,16], index: 12, kind: input, shape index: {}]
  %s13 = inlined_call_operand.hbm [shape: f32[16,32], index: 13, kind: input, shape index: {}]
  %s14 = inlined_call_operand.hbm [shape: f32[16,32], index: 14, kind: input, shape index: {}]
  %s15 = inlined_call_operand.vmem [shape: f32[16,32], index: 15, kind: input, shape index: {}]
  %s16 = inlined_call_operand.hbm [shape: f32[32,64], index: 16, kind: input, shape index: {}]
  %s17 = inlined_call_operand.hbm [shape: f32[32,64], index: 17, kind: input, shape index: {}]
  %s18 = inlined_call_operand.hbm [shape: f32[32,64], index: 18, kind: input, shape index: {}]
  %s19 = inlined_call_operand.vmem [shape: f32[64,384], index: 19, kind: input, shape index: {}]
  %s20 = inlined_call_operand.hbm [shape: f32[128,768], index: 20, kind: input, shape index: {}]
  %s21 = inlined_call_operand.hbm [shape: f32[4,256], index: 21, kind: output, shape index: {}]
  %s22 = sld [smem:[#allocation0]]
  $region138: #{cnn_decoder_forward.1} parent=0
    _
  %s24 = ssub.s32 1, %s22
  %s25 = scalar_select 0, %s24, %s22
  $region1: #{cnn_decoder_forward.1} parent=0
    #allocation2 [shape = 'u8[2048]{0}', space=vmem, size = 0x800, scoped, tag = 'input window, operand 7, single buffered']
    #allocation3 [shape = 's32[1]{0}', space=sflag, size = 0x4, scoped, tag = 'scoped memory for cnn_decoder_forward.1']
    #allocation4 [shape = 's32[1]{0}', space=sflag, size = 0x4, scoped, tag = 'scoped memory for cnn_decoder_forward.1']
    #allocation5 [shape = 'u8[2048]{0}', space=vmem, size = 0x800, scoped, tag = 'input window, operand 8, single buffered']
    #allocation6 [shape = 's32[1]{0}', space=sflag, size = 0x4, scoped, tag = 'scoped memory for cnn_decoder_forward.1']
    #allocation7 [shape = 'u8[2048]{0}', space=vmem, size = 0x800, scoped, tag = 'input window, operand 9, single buffered']
    #allocation8 [shape = 'u8[4096]{0}', space=vmem, size = 0x1000, scoped, tag = 'input window, operand 10, single buffered']
    #allocation9 [shape = 's32[1]{0}', space=sflag, size = 0x4, scoped, tag = 'scoped memory for cnn_decoder_forward.1']
    #allocation10 [shape = 'u8[4096]{0}', space=vmem, size = 0x1000, scoped, tag = 'input window, operand 11, single buffered']
    #allocation11 [shape = 'u8[8192]{0}', space=vmem, size = 0x2000, scoped, tag = 'input window, operand 13, single buffered']
    #allocation12 [shape = 's32[1]{0}', space=sflag, size = 0x4, scoped, tag = 'scoped memory for cnn_decoder_forward.1']
    #allocation13 [shape = 'u8[8192]{0}', space=vmem, size = 0x2000, scoped, tag = 'input window, operand 14, single buffered']
    #allocation14 [shape = 'u8[16384]{0}', space=vmem, size = 0x4000, scoped, tag = 'input window, operand 16, single buffered']
    #allocation15 [shape = 's32[1]{0}', space=sflag, size = 0x4, scoped, tag = 'scoped memory for cnn_decoder_forward.1']
    #allocation16 [shape = 'u8[16384]{0}', space=vmem, size = 0x4000, scoped, tag = 'input window, operand 17, single buffered']
    #allocation17 [shape = 'u8[16384]{0}', space=vmem, size = 0x4000, scoped, tag = 'input window, operand 18, single buffered']
    #allocation18 [shape = 's32[1]{0}', space=sflag, size = 0x4, scoped, tag = 'scoped memory for cnn_decoder_forward.1']
    #allocation19 [shape = 'u8[393216]{0}', space=vmem, size = 0x60000, scoped, tag = 'input window, operand 20, single buffered']
    #allocation20 [shape = 'u8[4096]{0}', space=vmem, size = 0x1000, scoped, tag = 'output window, operand 0, single buffered']
    %26 = vsyncpa [#allocation3], 0
    %27 = vsyncpa [#allocation6], 0
    %28 = vsyncpa [#allocation9], 0
    %29 = vsyncpa [#allocation12], 0
    %30 = vsyncpa [#allocation15], 0
    %31 = vsyncpa [#allocation18], 0
    %32 = vsyncpa [#allocation4], 0
    // Predicated region
    $region2: #{cnn_decoder_forward.1} parent=1 // pred_check
      _
    $region3: #{cnn_decoder_forward.1} parent=1 // pred_check_branch
      %34 = sbr.rel (0) target = $region5
    $region4: #{cnn_decoder_forward.1} parent=1 // pred_region
      _
    $region5: #{cnn_decoder_forward.1} parent=1 // pred_fallthru
      _
    // Predicated region
    $region6: #{cnn_decoder_forward.1} parent=1 // pred_check
      _
    $region7: #{cnn_decoder_forward.1} parent=1 // pred_check_branch
      %36 = sbr.rel (0) target = $region9
    $region8: #{cnn_decoder_forward.1} parent=1 // pred_region
      _
    $region9: #{cnn_decoder_forward.1} parent=1 // pred_fallthru
      _
    // Predicated region
    $region10: #{cnn_decoder_forward.1} parent=1 // pred_check
      _
    $region11: #{cnn_decoder_forward.1} parent=1 // pred_check_branch
      %38 = sbr.rel (0) target = $region13
    $region12: #{cnn_decoder_forward.1} parent=1 // pred_region
      _
    $region13: #{cnn_decoder_forward.1} parent=1 // pred_fallthru
      _
    // Predicated region
    $region14: #{cnn_decoder_forward.1} parent=1 // pred_check
      _
    $region15: #{cnn_decoder_forward.1} parent=1 // pred_check_branch
      %40 = sbr.rel (0) target = $region17
    $region16: #{cnn_decoder_forward.1} parent=1 // pred_region
      _
    $region17: #{cnn_decoder_forward.1} parent=1 // pred_fallthru
      _
    // Predicated region
    $region18: #{cnn_decoder_forward.1} parent=1 // pred_check
      _
    $region19: #{cnn_decoder_forward.1} parent=1 // pred_check_branch
      %42 = sbr.rel (0) target = $region21
    $region20: #{cnn_decoder_forward.1} parent=1 // pred_region
      _
    $region21: #{cnn_decoder_forward.1} parent=1 // pred_fallthru
      _
    // Predicated region
    $region22: #{cnn_decoder_forward.1} parent=1 // pred_check
      _
    $region23: #{cnn_decoder_forward.1} parent=1 // pred_check_branch
      %44 = sbr.rel (0) target = $region25
    $region24: #{cnn_decoder_forward.1} parent=1 // pred_region
      _
    $region25: #{cnn_decoder_forward.1} parent=1 // pred_fallthru
      _
    // Predicated region
    $region26: #{cnn_decoder_forward.1} parent=1 // pred_check
      _
    $region27: #{cnn_decoder_forward.1} parent=1 // pred_check_branch
      %46 = sbr.rel (0) target = $region29
    $region28: #{cnn_decoder_forward.1} parent=1 // pred_region
      _
    $region29: #{cnn_decoder_forward.1} parent=1 // pred_fallthru
      _
    // Predicated region
    $region30: #{cnn_decoder_forward.1} parent=1 // pred_check
      _
    $region31: #{cnn_decoder_forward.1} parent=1 // pred_check_branch
      %48 = sbr.rel (0) target = $region33
    $region32: #{cnn_decoder_forward.1} parent=1 // pred_region
      %50 = vsyncadd [#allocation3], 0
      %s52 = sshll.u32 %s7, 4
      %s53 = int_to_ptr.hbm [resolvable:$true] %s52
      %s54 = sshll.u32 [#allocation2], 4
      %s55 = int_to_ptr.vmem [resolvable:$true] %s54
      %57 = dma.hbm_to_vmem [thread:$0]  %s53, 64, %s55, [#allocation3]
    $region33: #{cnn_decoder_forward.1} parent=1 // pred_fallthru
      _
    // Predicated region
    $region34: #{cnn_decoder_forward.1} parent=1 // pred_check
      _
    $region35: #{cnn_decoder_forward.1} parent=1 // pred_check_branch
      %59 = sbr.rel (0) target = $region37
    $region36: #{cnn_decoder_forward.1} parent=1 // pred_region
      %61 = vsyncadd [#allocation6], 0
      %s63 = sshll.u32 %s8, 4
      %s64 = int_to_ptr.hbm [resolvable:$true] %s63
      %s65 = sshll.u32 [#allocation5], 4
      %s66 = int_to_ptr.vmem [resolvable:$true] %s65
      %68 = dma.hbm_to_vmem [thread:$0]  %s64, 64, %s66, [#allocation6]
    $region37: #{cnn_decoder_forward.1} parent=1 // pred_fallthru
      _
    // Predicated region
    $region38: #{cnn_decoder_forward.1} parent=1 // pred_check
      _
    $region39: #{cnn_decoder_forward.1} parent=1 // pred_check_branch
      %70 = sbr.rel (0) target = $region41
    $region40: #{cnn_decoder_forward.1} parent=1 // pred_region
      %72 = vsyncadd [#allocation6], 0
      %s74 = sshll.u32 %s9, 4
      %s75 = int_to_ptr.hbm [resolvable:$true] %s74
      %s76 = sshll.u32 [#allocation7], 4
      %s77 = int_to_ptr.vmem [resolvable:$true] %s76
      %79 = dma.hbm_to_vmem [thread:$0]  %s75, 64, %s77, [#allocation6]
    $region41: #{cnn_decoder_forward.1} parent=1 // pred_fallthru
      _
    // Predicated region
    $region42: #{cnn_decoder_forward.1} parent=1 // pred_check
      _
    $region43: #{cnn_decoder_forward.1} parent=1 // pred_check_branch
      %81 = sbr.rel (0) target = $region45
    $region44: #{cnn_decoder_forward.1} parent=1 // pred_region
      %83 = vsyncadd [#allocation9], 0
      %s85 = sshll.u32 %s10, 4
      %s86 = int_to_ptr.hbm [resolvable:$true] %s85
      %s87 = sshll.u32 [#allocation8], 4
      %s88 = int_to_ptr.vmem [resolvable:$true] %s87
      %90 = dma.hbm_to_vmem [thread:$0]  %s86, 128, %s88, [#allocation9]
    $region45: #{cnn_decoder_forward.1} parent=1 // pred_fallthru
      _
    // Predicated region
    $region46: #{cnn_decoder_forward.1} parent=1 // pred_check
      _
    $region47: #{cnn_decoder_forward.1} parent=1 // pred_check_branch
      %92 = sbr.rel (0) target = $region49
    $region48: #{cnn_decoder_forward.1} parent=1 // pred_region
      %94 = vsyncadd [#allocation9], 0
      %s96 = sshll.u32 %s11, 4
      %s97 = int_to_ptr.hbm [resolvable:$true] %s96
      %s98 = sshll.u32 [#allocation10], 4
      %s99 = int_to_ptr.vmem [resolvable:$true] %s98
      %101 = dma.hbm_to_vmem [thread:$0]  %s97, 128, %s99, [#allocation9]
    $region49: #{cnn_decoder_forward.1} parent=1 // pred_fallthru
      _
    // Predicated region
    $region50: #{cnn_decoder_forward.1} parent=1 // pred_check
      _
    $region51: #{cnn_decoder_forward.1} parent=1 // pred_check_branch
      %103 = sbr.rel (0) target = $region53
    $region52: #{cnn_decoder_forward.1} parent=1 // pred_region
      _
    $region53: #{cnn_decoder_forward.1} parent=1 // pred_fallthru
      _
    // Predicated region
    $region54: #{cnn_decoder_forward.1} parent=1 // pred_check
      _
    $region55: #{cnn_decoder_forward.1} parent=1 // pred_check_branch
      %105 = sbr.rel (0) target = $region57
    $region56: #{cnn_decoder_forward.1} parent=1 // pred_region
      %107 = vsyncadd [#allocation12], 0
      %s108 = sshll.u32 %s13, 4
      %s109 = int_to_ptr.hbm [resolvable:$true] %s108
      %s110 = sshll.u32 [#allocation11], 4
      %s111 = int_to_ptr.vmem [resolvable:$true] %s110
      %116 = dma.hbm_to_vmem [thread:$0]  %s109, 256, %s111, [#allocation12], 128, 128, 8
    $region57: #{cnn_decoder_forward.1} parent=1 // pred_fallthru
      _
    // Predicated region
    $region58: #{cnn_decoder_forward.1} parent=1 // pred_check
      _
    $region59: #{cnn_decoder_forward.1} parent=1 // pred_check_branch
      %118 = sbr.rel (0) target = $region61
    $region60: #{cnn_decoder_forward.1} parent=1 // pred_region
      %120 = vsyncadd [#allocation12], 0
      %s121 = sshll.u32 %s14, 4
      %s122 = int_to_ptr.hbm [resolvable:$true] %s121
      %s123 = sshll.u32 [#allocation13], 4
      %s124 = int_to_ptr.vmem [resolvable:$true] %s123
      %129 = dma.hbm_to_vmem [thread:$0]  %s122, 256, %s124, [#allocation12], 128, 128, 8
    $region61: #{cnn_decoder_forward.1} parent=1 // pred_fallthru
      _
    // Predicated region
    $region62: #{cnn_decoder_forward.1} parent=1 // pred_check
      _
    $region63: #{cnn_decoder_forward.1} parent=1 // pred_check_branch
      %131 = sbr.rel (0) target = $region65
    $region64: #{cnn_decoder_forward.1} parent=1 // pred_region
      _
    $region65: #{cnn_decoder_forward.1} parent=1 // pred_fallthru
      _
    // Predicated region
    $region66: #{cnn_decoder_forward.1} parent=1 // pred_check
      _
    $region67: #{cnn_decoder_forward.1} parent=1 // pred_check_branch
      %133 = sbr.rel (0) target = $region69
    $region68: #{cnn_decoder_forward.1} parent=1 // pred_region
      %135 = vsyncadd [#allocation15], 0
      %s136 = sshll.u32 %s16, 4
      %s137 = int_to_ptr.hbm [resolvable:$true] %s136
      %s138 = sshll.u32 [#allocation14], 4
      %s139 = int_to_ptr.vmem [resolvable:$true] %s138
      %144 = dma.hbm_to_vmem [thread:$0]  %s137, 512, %s139, [#allocation15], 128, 128, 8
    $region69: #{cnn_decoder_forward.1} parent=1 // pred_fallthru
      _
    // Predicated region
    $region70: #{cnn_decoder_forward.1} parent=1 // pred_check
      _
    $region71: #{cnn_decoder_forward.1} parent=1 // pred_check_branch
      %146 = sbr.rel (0) target = $region73
    $region72: #{cnn_decoder_forward.1} parent=1 // pred_region
      %148 = vsyncadd [#allocation15], 0
      %s149 = sshll.u32 %s17, 4
      %s150 = int_to_ptr.hbm [resolvable:$true] %s149
      %s151 = sshll.u32 [#allocation16], 4
      %s152 = int_to_ptr.vmem [resolvable:$true] %s151
      %157 = dma.hbm_to_vmem [thread:$0]  %s150, 512, %s152, [#allocation15], 128, 128, 8
    $region73: #{cnn_decoder_forward.1} parent=1 // pred_fallthru
      _
    // Predicated region
    $region74: #{cnn_decoder_forward.1} parent=1 // pred_check
      _
    $region75: #{cnn_decoder_forward.1} parent=1 // pred_check_branch
      %159 = sbr.rel (0) target = $region77
    $region76: #{cnn_decoder_forward.1} parent=1 // pred_region
      %161 = vsyncadd [#allocation18], 0
      %s162 = sshll.u32 %s18, 4
      %s163 = int_to_ptr.hbm [resolvable:$true] %s162
      %s164 = sshll.u32 [#allocation17], 4
      %s165 = int_to_ptr.vmem [resolvable:$true] %s164
      %170 = dma.hbm_to_vmem [thread:$0]  %s163, 512, %s165, [#allocation18], 128, 128, 8
    $region77: #{cnn_decoder_forward.1} parent=1 // pred_fallthru
      _
    // Predicated region
    $region78: #{cnn_decoder_forward.1} parent=1 // pred_check
      _
    $region79: #{cnn_decoder_forward.1} parent=1 // pred_check_branch
      %172 = sbr.rel (0) target = $region81
    $region80: #{cnn_decoder_forward.1} parent=1 // pred_region
      _
    $region81: #{cnn_decoder_forward.1} parent=1 // pred_fallthru
      _
    // Predicated region
    $region82: #{cnn_decoder_forward.1} parent=1 // pred_check
      _
    $region83: #{cnn_decoder_forward.1} parent=1 // pred_check_branch
      %174 = sbr.rel (0) target = $region85
    $region84: #{cnn_decoder_forward.1} parent=1 // pred_region
      %176 = vsyncadd [#allocation18], 0
      %s177 = sshll.u32 %s20, 4
      %s178 = int_to_ptr.hbm [resolvable:$true] %s177
      %s179 = sshll.u32 [#allocation19], 4
      %s180 = int_to_ptr.vmem [resolvable:$true] %s179
      %185 = dma.hbm_to_vmem [thread:$0]  %s178, 12288, %s180, [#allocation18], 768, 768, 48
    $region85: #{cnn_decoder_forward.1} parent=1 // pred_fallthru
      _
    // Predicated region
    $region86: #{cnn_decoder_forward.1} parent=1 // pred_check
      _
    $region87: #{cnn_decoder_forward.1} parent=1 // pred_check_branch
      %187 = sbr.rel (0) target = $region89
    $region88: #{cnn_decoder_forward.1} parent=1 // pred_region
      %189 = dma.done [#allocation3], 64
    $region89: #{cnn_decoder_forward.1} parent=1 // pred_fallthru
      _
    // Predicated region
    $region90: #{cnn_decoder_forward.1} parent=1 // pred_check
      _
    $region91: #{cnn_decoder_forward.1} parent=1 // pred_check_branch
      %191 = sbr.rel (0) target = $region93
    $region92: #{cnn_decoder_forward.1} parent=1 // pred_region
      %193 = dma.done [#allocation6], 64
    $region93: #{cnn_decoder_forward.1} parent=1 // pred_fallthru
      _
    // Predicated region
    $region94: #{cnn_decoder_forward.1} parent=1 // pred_check
      _
    $region95: #{cnn_decoder_forward.1} parent=1 // pred_check_branch
      %195 = sbr.rel (0) target = $region97
    $region96: #{cnn_decoder_forward.1} parent=1 // pred_region
      %197 = dma.done [#allocation6], 64
    $region97: #{cnn_decoder_forward.1} parent=1 // pred_fallthru
      _
    // Predicated region
    $region98: #{cnn_decoder_forward.1} parent=1 // pred_check
      _
    $region99: #{cnn_decoder_forward.1} parent=1 // pred_check_branch
      %199 = sbr.rel (0) target = $region101
    $region100: #{cnn_decoder_forward.1} parent=1 // pred_region
      %201 = dma.done [#allocation9], 128
    $region101: #{cnn_decoder_forward.1} parent=1 // pred_fallthru
      _
    // Predicated region
    $region102: #{cnn_decoder_forward.1} parent=1 // pred_check
      _
    $region103: #{cnn_decoder_forward.1} parent=1 // pred_check_branch
      %203 = sbr.rel (0) target = $region105
    $region104: #{cnn_decoder_forward.1} parent=1 // pred_region
      %205 = dma.done [#allocation9], 128
    $region105: #{cnn_decoder_forward.1} parent=1 // pred_fallthru
      _
    // Predicated region
    $region106: #{cnn_decoder_forward.1} parent=1 // pred_check
      _
    $region107: #{cnn_decoder_forward.1} parent=1 // pred_check_branch
      %207 = sbr.rel (0) target = $region109
    $region108: #{cnn_decoder_forward.1} parent=1 // pred_region
      %209 = dma.done [#allocation12], 256
    $region109: #{cnn_decoder_forward.1} parent=1 // pred_fallthru
      _
    // Predicated region
    $region110: #{cnn_decoder_forward.1} parent=1 // pred_check
      _
    $region111: #{cnn_decoder_forward.1} parent=1 // pred_check_branch
      %211 = sbr.rel (0) target = $region113
    $region112: #{cnn_decoder_forward.1} parent=1 // pred_region
      %213 = dma.done [#allocation12], 256
    $region113: #{cnn_decoder_forward.1} parent=1 // pred_fallthru
      _
    // Predicated region
    $region114: #{cnn_decoder_forward.1} parent=1 // pred_check
      _
    $region115: #{cnn_decoder_forward.1} parent=1 // pred_check_branch
      %215 = sbr.rel (0) target = $region117
    $region116: #{cnn_decoder_forward.1} parent=1 // pred_region
      %217 = dma.done [#allocation15], 512
    $region117: #{cnn_decoder_forward.1} parent=1 // pred_fallthru
      _
    // Predicated region
    $region118: #{cnn_decoder_forward.1} parent=1 // pred_check
      _
    $region119: #{cnn_decoder_forward.1} parent=1 // pred_check_branch
      %219 = sbr.rel (0) target = $region121
    $region120: #{cnn_decoder_forward.1} parent=1 // pred_region
      %221 = dma.done [#allocation15], 512
    $region121: #{cnn_decoder_forward.1} parent=1 // pred_fallthru
      _
    // Predicated region
    $region122: #{cnn_decoder_forward.1} parent=1 // pred_check
      _
    $region123: #{cnn_decoder_forward.1} parent=1 // pred_check_branch
      %223 = sbr.rel (0) target = $region125
    $region124: #{cnn_decoder_forward.1} parent=1 // pred_region
      %225 = dma.done [#allocation18], 512
    $region125: #{cnn_decoder_forward.1} parent=1 // pred_fallthru
      _
    // Predicated region
    $region126: #{cnn_decoder_forward.1} parent=1 // pred_check
      _
    $region127: #{cnn_decoder_forward.1} parent=1 // pred_check_branch
      %227 = sbr.rel (0) target = $region129
    $region128: #{cnn_decoder_forward.1} parent=1 // pred_region
      %229 = dma.done [#allocation18], 12288
    $region129: #{cnn_decoder_forward.1} parent=1 // pred_fallthru
      _
    %v230 = vld [vmem:[%s0] sm:$0xff]
    %v231 = vld [vmem:[%s0 + $0x8] sm:$0xff]
    %v232 = vld [vmem:[%s0 + $0x10] sm:$0xff]
    %v233 = vld [vmem:[%s0 + $0x18] sm:$0xff]
    %v234 = vld [vmem:[%s0 + $0x20] sm:$0xff]
    %v235 = vld [vmem:[%s0 + $0x28] sm:$0xff]
    %v236 = vld [vmem:[%s1] sm:$0xff]
    %v237 = vld [vmem:[%s1 + $0x8] sm:$0xff]
    %v238 = vld [vmem:[%s2] sm:$0xff]
    %v239 = vld [vmem:[%s2 + $0x8] sm:$0xff]
    %v240 = vld [vmem:[%s3] sm:$0xff]
    %v241 = vld [vmem:[%s3 + $0x8] sm:$0xff]
    %vm242 = vcmask 392192
    %v244 = vsel %vm242, %v236, 0
    %v247 = vsel %vm242, %v237, 0
    %249 = vmatpush.msra.mxu0 0.0
    %250 = vmatpush.msra.mxu0 0.0
    %251 = vmatpush.msra.mxu0 0.0
    %252 = vmatpush.msra.mxu0 0.0
    %253 = vmatpush.msra.mxu0 0.0
    %254 = vmatpush.msra.mxu0 0.0
    %255 = vmatpush.msra.mxu0 0.0
    %256 = vmatpush.msra.mxu0 0.0
    %257 = vmatpush.msra.mxu0 0.0
    %258 = vmatpush.msra.mxu0 0.0
    %259 = vmatpush.msra.mxu0 %v235
    %260 = vmatpush.msra.mxu0 %v234
    %261 = vmatpush.msra.mxu0 %v233
    %262 = vmatpush.msra.mxu0 %v232
    %263 = vmatpush.msra.mxu0 %v231
    %264 = vmatpush.msra.mxu0 %v230
    %265 = vmatmul.f32.gmra.mxu0 %v244
    %v266 = vpop.f32.mrf.mxu0
    %v267 = vadd.f32 0.0, %v266
    %268 = vmatmul.f32.gmra.mxu0 %v247
    %v269 = vpop.f32.mrf.mxu0
    %v270 = vadd.f32 0.0, %v269
    %271 = vdwg.mxu0
    %vm272 = vcmask 31744
    %v273 = vsel %vm272, %v267, 0.0
    %274 = vadd.xlane.f32.xlu0 %v273
    %v275 = vpop.xlane.xlu0 %274
    %v276 = vsel %vm272, %v270, 0.0
    %277 = vadd.xlane.f32.xlu0 %v276
    %v278 = vpop.xlane.xlu0 %277
    %v279 = vrcp.pop 4.0
    %v280 = vmul.f32 4.0, %v279
    %v281 = vsub.f32 1.0, %v280
    %v282 = vmul.f32 %v279, %v281
    %v283 = vadd.f32 %v279, %v282
    %vm284 = vweird.f32 %v279
    %v285 = vsel %vm284, %v279, %v283
    %v286 = vmul.f32 %v275, %v285
    %v287 = vmul.f32 %v278, %v285
    %v288 = vmul.f32 %v267, %v267
    %v289 = vmul.f32 %v270, %v270
    %v290 = vsel %vm272, %v288, 0.0
    %291 = vadd.xlane.f32.xlu0 %v290
    %v292 = vpop.xlane.xlu0 %291
    %v293 = vsel %vm272, %v289, 0.0
    %294 = vadd.xlane.f32.xlu0 %v293
    %v295 = vpop.xlane.xlu0 %294
    %v296 = vmul.f32 %v292, %v285
    %v297 = vmul.f32 %v295, %v285
    %v298 = vmul.f32 %v286, %v286
    %v299 = vmul.f32 %v287, %v287
    %v300 = vsub.f32 %v296, %v298
    %v301 = vsub.f32 %v297, %v299
    %v302 = vadd.f32 %v300, 1e-05
    %v303 = vadd.f32 %v301, 1e-05
    %v304 = vrsqrt.pop %v302
    %v305 = vmul.f32 %v304, %v302
    %v306 = vmul.f32 %v305, %v304
    %v307 = vmul.f32 0.5, %v306
    %v308 = vsub.f32 1.5, %v307
    %v309 = vmul.f32 %v304, %v308
    %vm310 = vweird.f32 %v302
    %vm311 = vweird.f32 %v304
    %vm312 = vmor %vm310, %vm311
    %v313 = vsel %vm312, %v304, %v309
    %v314 = vrsqrt.pop %v303
    %v315 = vmul.f32 %v314, %v303
    %v316 = vmul.f32 %v315, %v314
    %v317 = vmul.f32 0.5, %v316
    %v318 = vsub.f32 1.5, %v317
    %v319 = vmul.f32 %v314, %v318
    %vm320 = vweird.f32 %v303
    %vm321 = vweird.f32 %v314
    %vm322 = vmor %vm320, %vm321
    %v323 = vsel %vm322, %v314, %v319
    %v324 = vmul.f32 %v313, %v238
    %v325 = vmul.f32 %v323, %v239
    %v326 = vmul.f32 %v286, %v324
    %v327 = vmul.f32 %v287, %v325
    %v328 = vsub.f32 %v240, %v326
    %v329 = vsub.f32 %v241, %v327
    %331 = vset.pattern.permute.xlu0 0
    %332 = vperm.xlu0 %331, %v324
    %v333 = vpop.permute.xlu0 %332
    %336 = vset.pattern.permute.xlu0 0
    %337 = vperm.xlu0 %336, %v325
    %v338 = vpop.permute.xlu0 %337
    %v340 = vmul.f32 %v267, %v333
    %v341 = vmul.f32 %v270, %v338
    %343 = vset.pattern.permute.xlu0 0
    %344 = vperm.xlu0 %343, %v328
    %v345 = vpop.permute.xlu0 %344
    %348 = vset.pattern.permute.xlu0 0
    %349 = vperm.xlu0 %348, %v329
    %v350 = vpop.permute.xlu0 %349
    %v352 = vadd.f32 %v340, %v345
    %v353 = vadd.f32 %v341, %v350
    %v354 = vmax.f32 %v352, 0.0
    %v355 = vmax.f32 %v353, 0.0
    %v356 = vld [vmem:[#allocation2] sm:$0xf]
    %v358 = vsel %vm272, %v354, 0
    %v361 = vsel %vm272, %v355, 0
    %vm363 = vcmask 1043456
    %v365 = vsel %vm363, %v356, 0
    %367 = vmatpush.msra.mxu0 0.0
    %368 = vmatpush.msra.mxu0 0.0
    %369 = vmatpush.msra.mxu0 0.0
    %370 = vmatpush.msra.mxu0 0.0
    %371 = vmatpush.msra.mxu0 0.0
    %372 = vmatpush.msra.mxu0 0.0
    %373 = vmatpush.msra.mxu0 0.0
    %374 = vmatpush.msra.mxu0 0.0
    %375 = vmatpush.msra.mxu0 0.0
    %376 = vmatpush.msra.mxu0 0.0
    %377 = vmatpush.msra.mxu0 0.0
    %378 = vmatpush.msra.mxu0 0.0
    %379 = vmatpush.msra.mxu0 0.0
    %380 = vmatpush.msra.mxu0 0.0
    %381 = vmatpush.msra.mxu0 0.0
    %382 = vmatpush.msra.mxu0 %v365
    %383 = vmatmul.f32.gmra.mxu0 %v358
    %v384 = vpop.f32.mrf.mxu0
    %v385 = vadd.f32 0.0, %v384
    %386 = vmatmul.f32.gmra.mxu0 %v361
    %v387 = vpop.f32.mrf.mxu0
    %v388 = vadd.f32 0.0, %v387
    %389 = vdwg.mxu0
    %v390 = vld [vmem:[#allocation5] sm:$0xf]
    %v392 = vsel %vm363, %v390, 0
    %394 = vmatpush.msra.mxu0 0.0
    %395 = vmatpush.msra.mxu0 0.0
    %396 = vmatpush.msra.mxu0 0.0
    %397 = vmatpush.msra.mxu0 0.0
    %398 = vmatpush.msra.mxu0 0.0
    %399 = vmatpush.msra.mxu0 0.0
    %400 = vmatpush.msra.mxu0 0.0
    %401 = vmatpush.msra.mxu0 0.0
    %402 = vmatpush.msra.mxu0 0.0
    %403 = vmatpush.msra.mxu0 0.0
    %404 = vmatpush.msra.mxu0 0.0
    %405 = vmatpush.msra.mxu0 0.0
    %406 = vmatpush.msra.mxu0 0.0
    %407 = vmatpush.msra.mxu0 0.0
    %408 = vmatpush.msra.mxu0 0.0
    %409 = vmatpush.msra.mxu0 %v392
    %410 = vmatmul.f32.gmra.mxu0 %v358
    %v411 = vpop.f32.mrf.mxu0
    %v412 = vadd.f32 0.0, %v411
    %413 = vmatmul.f32.gmra.mxu0 %v361
    %v414 = vpop.f32.mrf.mxu0
    %v415 = vadd.f32 0.0, %v414
    %416 = vdwg.mxu0
    %v417 = vld [vmem:[#allocation7] sm:$0xf]
    %v419 = vsel %vm363, %v417, 0
    %421 = vmatpush.msra.mxu0 0.0
    %422 = vmatpush.msra.mxu0 0.0
    %423 = vmatpush.msra.mxu0 0.0
    %424 = vmatpush.msra.mxu0 0.0
    %425 = vmatpush.msra.mxu0 0.0
    %426 = vmatpush.msra.mxu0 0.0
    %427 = vmatpush.msra.mxu0 0.0
    %428 = vmatpush.msra.mxu0 0.0
    %429 = vmatpush.msra.mxu0 0.0
    %430 = vmatpush.msra.mxu0 0.0
    %431 = vmatpush.msra.mxu0 0.0
    %432 = vmatpush.msra.mxu0 0.0
    %433 = vmatpush.msra.mxu0 0.0
    %434 = vmatpush.msra.mxu0 0.0
    %435 = vmatpush.msra.mxu0 0.0
    %436 = vmatpush.msra.mxu0 %v419
    %437 = vmatmul.f32.gmra.mxu0 %v358
    %v438 = vpop.f32.mrf.mxu0
    %v439 = vadd.f32 0.0, %v438
    %440 = vmatmul.f32.gmra.mxu0 %v361
    %v441 = vpop.f32.mrf.mxu0
    %v442 = vadd.f32 0.0, %v441
    %443 = vdwg.mxu0
    %s444 = scalar_lea.vmem %s1, 16
    %v445 = vld [vmem:[%s444] sm:$0xff]
    %v446 = vld [vmem:[%s444 + $0x8] sm:$0xff]
    %s447 = scalar_lea.vmem %s2, 16
    %v448 = vld [vmem:[%s447] sm:$0xff]
    %v449 = vld [vmem:[%s447 + $0x8] sm:$0xff]
    %s450 = scalar_lea.vmem %s3, 16
    %v451 = vld [vmem:[%s450] sm:$0xff]
    %v452 = vld [vmem:[%s450 + $0x8] sm:$0xff]
    %v454 = vsel %vm242, %v445, 0
    %v457 = vsel %vm242, %v446, 0
    %459 = vmatpush.msra.mxu0 0.0
    %460 = vmatpush.msra.mxu0 0.0
    %461 = vmatpush.msra.mxu0 0.0
    %462 = vmatpush.msra.mxu0 0.0
    %463 = vmatpush.msra.mxu0 0.0
    %464 = vmatpush.msra.mxu0 0.0
    %465 = vmatpush.msra.mxu0 0.0
    %466 = vmatpush.msra.mxu0 0.0
    %467 = vmatpush.msra.mxu0 0.0
    %468 = vmatpush.msra.mxu0 0.0
    %469 = vmatpush.msra.mxu0 %v442
    %470 = vmatpush.msra.mxu0 %v439
    %471 = vmatpush.msra.mxu0 %v415
    %472 = vmatpush.msra.mxu0 %v412
    %473 = vmatpush.msra.mxu0 %v388
    %474 = vmatpush.msra.mxu0 %v385
    %475 = vmatmul.f32.gmra.mxu0 %v454
    %v476 = vpop.f32.mrf.mxu0
    %v477 = vadd.f32 0.0, %v476
    %478 = vmatmul.f32.gmra.mxu0 %v457
    %v479 = vpop.f32.mrf.mxu0
    %v480 = vadd.f32 0.0, %v479
    %481 = vdwg.mxu0
    %vm482 = vcmask 64512
    %v483 = vsel %vm482, %v477, 0.0
    %484 = vadd.xlane.f32.xlu0 %v483
    %v485 = vpop.xlane.xlu0 %484
    %v486 = vsel %vm482, %v480, 0.0
    %487 = vadd.xlane.f32.xlu0 %v486
    %v488 = vpop.xlane.xlu0 %487
    %v489 = vrcp.pop 8.0
    %v490 = vmul.f32 8.0, %v489
    %v491 = vsub.f32 1.0, %v490
    %v492 = vmul.f32 %v489, %v491
    %v493 = vadd.f32 %v489, %v492
    %vm494 = vweird.f32 %v489
    %v495 = vsel %vm494, %v489, %v493
    %v496 = vmul.f32 %v485, %v495
    %v497 = vmul.f32 %v488, %v495
    %v498 = vmul.f32 %v477, %v477
    %v499 = vmul.f32 %v480, %v480
    %v500 = vsel %vm482, %v498, 0.0
    %501 = vadd.xlane.f32.xlu0 %v500
    %v502 = vpop.xlane.xlu0 %501
    %v503 = vsel %vm482, %v499, 0.0
    %504 = vadd.xlane.f32.xlu0 %v503
    %v505 = vpop.xlane.xlu0 %504
    %v506 = vmul.f32 %v502, %v495
    %v507 = vmul.f32 %v505, %v495
    %v508 = vmul.f32 %v496, %v496
    %v509 = vmul.f32 %v497, %v497
    %v510 = vsub.f32 %v506, %v508
    %v511 = vsub.f32 %v507, %v509
    %v512 = vadd.f32 %v510, 1e-05
    %v513 = vadd.f32 %v511, 1e-05
    %v514 = vrsqrt.pop %v512
    %v515 = vmul.f32 %v514, %v512
    %v516 = vmul.f32 %v515, %v514
    %v517 = vmul.f32 0.5, %v516
    %v518 = vsub.f32 1.5, %v517
    %v519 = vmul.f32 %v514, %v518
    %vm520 = vweird.f32 %v512
    %vm521 = vweird.f32 %v514
    %vm522 = vmor %vm520, %vm521
    %v523 = vsel %vm522, %v514, %v519
    %v524 = vrsqrt.pop %v513
    %v525 = vmul.f32 %v524, %v513
    %v526 = vmul.f32 %v525, %v524
    %v527 = vmul.f32 0.5, %v526
    %v528 = vsub.f32 1.5, %v527
    %v529 = vmul.f32 %v524, %v528
    %vm530 = vweird.f32 %v513
    %vm531 = vweird.f32 %v524
    %vm532 = vmor %vm530, %vm531
    %v533 = vsel %vm532, %v524, %v529
    %v534 = vmul.f32 %v523, %v448
    %v535 = vmul.f32 %v533, %v449
    %v536 = vmul.f32 %v496, %v534
    %v537 = vmul.f32 %v497, %v535
    %v538 = vsub.f32 %v451, %v536
    %v539 = vsub.f32 %v452, %v537
    %541 = vset.pattern.permute.xlu0 0
    %542 = vperm.xlu0 %541, %v534
    %v543 = vpop.permute.xlu0 %542
    %546 = vset.pattern.permute.xlu0 0
    %547 = vperm.xlu0 %546, %v535
    %v548 = vpop.permute.xlu0 %547
    %v550 = vmul.f32 %v477, %v543
    %v551 = vmul.f32 %v480, %v548
    %553 = vset.pattern.permute.xlu0 0
    %554 = vperm.xlu0 %553, %v538
    %v555 = vpop.permute.xlu0 %554
    %558 = vset.pattern.permute.xlu0 0
    %559 = vperm.xlu0 %558, %v539
    %v560 = vpop.permute.xlu0 %559
    %v562 = vadd.f32 %v550, %v555
    %v563 = vadd.f32 %v551, %v560
    %v564 = vmax.f32 %v562, 0.0
    %v565 = vmax.f32 %v563, 0.0
    %v566 = vld [vmem:[#allocation8] sm:$0xff]
    %v568 = vsel %vm482, %v564, 0
    %v571 = vsel %vm482, %v565, 0
    %573 = vmatpush.msra.mxu0 0.0
    %574 = vmatpush.msra.mxu0 0.0
    %575 = vmatpush.msra.mxu0 0.0
    %576 = vmatpush.msra.mxu0 0.0
    %577 = vmatpush.msra.mxu0 0.0
    %578 = vmatpush.msra.mxu0 0.0
    %579 = vmatpush.msra.mxu0 0.0
    %580 = vmatpush.msra.mxu0 0.0
    %581 = vmatpush.msra.mxu0 0.0
    %582 = vmatpush.msra.mxu0 0.0
    %583 = vmatpush.msra.mxu0 0.0
    %584 = vmatpush.msra.mxu0 0.0
    %585 = vmatpush.msra.mxu0 0.0
    %586 = vmatpush.msra.mxu0 0.0
    %587 = vmatpush.msra.mxu0 0.0
    %588 = vmatpush.msra.mxu0 %v566
    %589 = vmatmul.f32.gmra.mxu0 %v568
    %v590 = vpop.f32.mrf.mxu0
    %v591 = vadd.f32 0.0, %v590
    %592 = vmatmul.f32.gmra.mxu0 %v571
    %v593 = vpop.f32.mrf.mxu0
    %v594 = vadd.f32 0.0, %v593
    %595 = vdwg.mxu0
    %v596 = vld [vmem:[#allocation10] sm:$0xff]
    %597 = vmatpush.msra.mxu0 0.0
    %598 = vmatpush.msra.mxu0 0.0
    %599 = vmatpush.msra.mxu0 0.0
    %600 = vmatpush.msra.mxu0 0.0
    %601 = vmatpush.msra.mxu0 0.0
    %602 = vmatpush.msra.mxu0 0.0
    %603 = vmatpush.msra.mxu0 0.0
    %604 = vmatpush.msra.mxu0 0.0
    %605 = vmatpush.msra.mxu0 0.0
    %606 = vmatpush.msra.mxu0 0.0
    %607 = vmatpush.msra.mxu0 0.0
    %608 = vmatpush.msra.mxu0 0.0
    %609 = vmatpush.msra.mxu0 0.0
    %610 = vmatpush.msra.mxu0 0.0
    %611 = vmatpush.msra.mxu0 0.0
    %612 = vmatpush.msra.mxu0 %v596
    %613 = vmatmul.f32.gmra.mxu0 %v568
    %v614 = vpop.f32.mrf.mxu0
    %v615 = vadd.f32 0.0, %v614
    %616 = vmatmul.f32.gmra.mxu0 %v571
    %v617 = vpop.f32.mrf.mxu0
    %v618 = vadd.f32 0.0, %v617
    %619 = vdwg.mxu0
    %v620 = vld [vmem:[%s12] sm:$0xff]
    %621 = vmatpush.msra.mxu0 0.0
    %622 = vmatpush.msra.mxu0 0.0
    %623 = vmatpush.msra.mxu0 0.0
    %624 = vmatpush.msra.mxu0 0.0
    %625 = vmatpush.msra.mxu0 0.0
    %626 = vmatpush.msra.mxu0 0.0
    %627 = vmatpush.msra.mxu0 0.0
    %628 = vmatpush.msra.mxu0 0.0
    %629 = vmatpush.msra.mxu0 0.0
    %630 = vmatpush.msra.mxu0 0.0
    %631 = vmatpush.msra.mxu0 0.0
    %632 = vmatpush.msra.mxu0 0.0
    %633 = vmatpush.msra.mxu0 0.0
    %634 = vmatpush.msra.mxu0 0.0
    %635 = vmatpush.msra.mxu0 0.0
    %636 = vmatpush.msra.mxu0 %v620
    %637 = vmatmul.f32.gmra.mxu0 %v568
    %v638 = vpop.f32.mrf.mxu0
    %v639 = vadd.f32 0.0, %v638
    %640 = vmatmul.f32.gmra.mxu0 %v571
    %v641 = vpop.f32.mrf.mxu0
    %v642 = vadd.f32 0.0, %v641
    %643 = vdwg.mxu0
    %s644 = scalar_lea.vmem %s1, 32
    %v645 = vld [vmem:[%s644] sm:$0xff]
    %v646 = vld [vmem:[%s644 + $0x8] sm:$0xff]
    %s647 = scalar_lea.vmem %s2, 32
    %v648 = vld [vmem:[%s647] sm:$0xff]
    %v649 = vld [vmem:[%s647 + $0x8] sm:$0xff]
    %s650 = scalar_lea.vmem %s3, 32
    %v651 = vld [vmem:[%s650] sm:$0xff]
    %v652 = vld [vmem:[%s650 + $0x8] sm:$0xff]
    %v654 = vsel %vm242, %v645, 0
    %v657 = vsel %vm242, %v646, 0
    %659 = vmatpush.msra.mxu0 0.0
    %660 = vmatpush.msra.mxu0 0.0
    %661 = vmatpush.msra.mxu0 0.0
    %662 = vmatpush.msra.mxu0 0.0
    %663 = vmatpush.msra.mxu0 0.0
    %664 = vmatpush.msra.mxu0 0.0
    %665 = vmatpush.msra.mxu0 0.0
    %666 = vmatpush.msra.mxu0 0.0
    %667 = vmatpush.msra.mxu0 0.0
    %668 = vmatpush.msra.mxu0 0.0
    %669 = vmatpush.msra.mxu0 %v642
    %670 = vmatpush.msra.mxu0 %v639
    %671 = vmatpush.msra.mxu0 %v618
    %672 = vmatpush.msra.mxu0 %v615
    %673 = vmatpush.msra.mxu0 %v594
    %674 = vmatpush.msra.mxu0 %v591
    %675 = vmatmul.f32.gmra.mxu0 %v654
    %v676 = vpop.f32.mrf.mxu0
    %v677 = vadd.f32 0.0, %v676
    %678 = vmatmul.f32.gmra.mxu0 %v657
    %v679 = vpop.f32.mrf.mxu0
    %v680 = vadd.f32 0.0, %v679
    %681 = vdwg.mxu0
    %vm682 = vcmask 130048
    %v683 = vsel %vm682, %v677, 0.0
    %684 = vadd.xlane.f32.xlu0 %v683
    %v685 = vpop.xlane.xlu0 %684
    %v686 = vsel %vm682, %v680, 0.0
    %687 = vadd.xlane.f32.xlu0 %v686
    %v688 = vpop.xlane.xlu0 %687
    %v689 = vrcp.pop 16.0
    %v690 = vmul.f32 16.0, %v689
    %v691 = vsub.f32 1.0, %v690
    %v692 = vmul.f32 %v689, %v691
    %v693 = vadd.f32 %v689, %v692
    %vm694 = vweird.f32 %v689
    %v695 = vsel %vm694, %v689, %v693
    %v696 = vmul.f32 %v685, %v695
    %v697 = vmul.f32 %v688, %v695
    %v698 = vmul.f32 %v677, %v677
    %v699 = vmul.f32 %v680, %v680
    %v700 = vsel %vm682, %v698, 0.0
    %701 = vadd.xlane.f32.xlu0 %v700
    %v702 = vpop.xlane.xlu0 %701
    %v703 = vsel %vm682, %v699, 0.0
    %704 = vadd.xlane.f32.xlu0 %v703
    %v705 = vpop.xlane.xlu0 %704
    %v706 = vmul.f32 %v702, %v695
    %v707 = vmul.f32 %v705, %v695
    %v708 = vmul.f32 %v696, %v696
    %v709 = vmul.f32 %v697, %v697
    %v710 = vsub.f32 %v706, %v708
    %v711 = vsub.f32 %v707, %v709
    %v712 = vadd.f32 %v710, 1e-05
    %v713 = vadd.f32 %v711, 1e-05
    %v714 = vrsqrt.pop %v712
    %v715 = vmul.f32 %v714, %v712
    %v716 = vmul.f32 %v715, %v714
    %v717 = vmul.f32 0.5, %v716
    %v718 = vsub.f32 1.5, %v717
    %v719 = vmul.f32 %v714, %v718
    %vm720 = vweird.f32 %v712
    %vm721 = vweird.f32 %v714
    %vm722 = vmor %vm720, %vm721
    %v723 = vsel %vm722, %v714, %v719
    %v724 = vrsqrt.pop %v713
    %v725 = vmul.f32 %v724, %v713
    %v726 = vmul.f32 %v725, %v724
    %v727 = vmul.f32 0.5, %v726
    %v728 = vsub.f32 1.5, %v727
    %v729 = vmul.f32 %v724, %v728
    %vm730 = vweird.f32 %v713
    %vm731 = vweird.f32 %v724
    %vm732 = vmor %vm730, %vm731
    %v733 = vsel %vm732, %v724, %v729
    %v734 = vmul.f32 %v723, %v648
    %v735 = vmul.f32 %v733, %v649
    %v736 = vmul.f32 %v696, %v734
    %v737 = vmul.f32 %v697, %v735
    %v738 = vsub.f32 %v651, %v736
    %v739 = vsub.f32 %v652, %v737
    %741 = vset.pattern.permute.xlu0 0
    %742 = vperm.xlu0 %741, %v734
    %v743 = vpop.permute.xlu0 %742
    %746 = vset.pattern.permute.xlu0 0
    %747 = vperm.xlu0 %746, %v735
    %v748 = vpop.permute.xlu0 %747
    %v750 = vmul.f32 %v677, %v743
    %v751 = vmul.f32 %v680, %v748
    %753 = vset.pattern.permute.xlu0 0
    %754 = vperm.xlu0 %753, %v738
    %v755 = vpop.permute.xlu0 %754
    %758 = vset.pattern.permute.xlu0 0
    %759 = vperm.xlu0 %758, %v739
    %v760 = vpop.permute.xlu0 %759
    %v762 = vadd.f32 %v750, %v755
    %v763 = vadd.f32 %v751, %v760
    %v764 = vmax.f32 %v762, 0.0
    %v765 = vmax.f32 %v763, 0.0
    %v766 = vld [vmem:[#allocation11] sm:$0xff]
    %v767 = vld [vmem:[#allocation11 + $0x8] sm:$0xff]
    %v769 = vsel %vm682, %v764, 0
    %v772 = vsel %vm682, %v765, 0
    %774 = vmatpush.msra.mxu0 0.0
    %775 = vmatpush.msra.mxu0 0.0
    %776 = vmatpush.msra.mxu0 0.0
    %777 = vmatpush.msra.mxu0 0.0
    %778 = vmatpush.msra.mxu0 0.0
    %779 = vmatpush.msra.mxu0 0.0
    %780 = vmatpush.msra.mxu0 0.0
    %781 = vmatpush.msra.mxu0 0.0
    %782 = vmatpush.msra.mxu0 0.0
    %783 = vmatpush.msra.mxu0 0.0
    %784 = vmatpush.msra.mxu0 0.0
    %785 = vmatpush.msra.mxu0 0.0
    %786 = vmatpush.msra.mxu0 0.0
    %787 = vmatpush.msra.mxu0 0.0
    %788 = vmatpush.msra.mxu0 %v767
    %789 = vmatpush.msra.mxu0 %v766
    %790 = vmatmul.f32.gmra.mxu0 %v769
    %v791 = vpop.f32.mrf.mxu0
    %v792 = vadd.f32 0.0, %v791
    %793 = vmatmul.f32.gmra.mxu0 %v772
    %v794 = vpop.f32.mrf.mxu0
    %v795 = vadd.f32 0.0, %v794
    %796 = vdwg.mxu0
    %v797 = vld [vmem:[#allocation13] sm:$0xff]
    %v798 = vld [vmem:[#allocation13 + $0x8] sm:$0xff]
    %799 = vmatpush.msra.mxu0 0.0
    %800 = vmatpush.msra.mxu0 0.0
    %801 = vmatpush.msra.mxu0 0.0
    %802 = vmatpush.msra.mxu0 0.0
    %803 = vmatpush.msra.mxu0 0.0
    %804 = vmatpush.msra.mxu0 0.0
    %805 = vmatpush.msra.mxu0 0.0
    %806 = vmatpush.msra.mxu0 0.0
    %807 = vmatpush.msra.mxu0 0.0
    %808 = vmatpush.msra.mxu0 0.0
    %809 = vmatpush.msra.mxu0 0.0
    %810 = vmatpush.msra.mxu0 0.0
    %811 = vmatpush.msra.mxu0 0.0
    %812 = vmatpush.msra.mxu0 0.0
    %813 = vmatpush.msra.mxu0 %v798
    %814 = vmatpush.msra.mxu0 %v797
    %815 = vmatmul.f32.gmra.mxu0 %v769
    %v816 = vpop.f32.mrf.mxu0
    %v817 = vadd.f32 0.0, %v816
    %818 = vmatmul.f32.gmra.mxu0 %v772
    %v819 = vpop.f32.mrf.mxu0
    %v820 = vadd.f32 0.0, %v819
    %821 = vdwg.mxu0
    %v822 = vld [vmem:[%s15] sm:$0xff]
    %v823 = vld [vmem:[%s15 + $0x8] sm:$0xff]
    %824 = vmatpush.msra.mxu0 0.0
    %825 = vmatpush.msra.mxu0 0.0
    %826 = vmatpush.msra.mxu0 0.0
    %827 = vmatpush.msra.mxu0 0.0
    %828 = vmatpush.msra.mxu0 0.0
    %829 = vmatpush.msra.mxu0 0.0
    %830 = vmatpush.msra.mxu0 0.0
    %831 = vmatpush.msra.mxu0 0.0
    %832 = vmatpush.msra.mxu0 0.0
    %833 = vmatpush.msra.mxu0 0.0
    %834 = vmatpush.msra.mxu0 0.0
    %835 = vmatpush.msra.mxu0 0.0
    %836 = vmatpush.msra.mxu0 0.0
    %837 = vmatpush.msra.mxu0 0.0
    %838 = vmatpush.msra.mxu0 %v823
    %839 = vmatpush.msra.mxu0 %v822
    %840 = vmatmul.f32.gmra.mxu0 %v769
    %v841 = vpop.f32.mrf.mxu0
    %v842 = vadd.f32 0.0, %v841
    %843 = vmatmul.f32.gmra.mxu0 %v772
    %v844 = vpop.f32.mrf.mxu0
    %v845 = vadd.f32 0.0, %v844
    %846 = vdwg.mxu0
    %s847 = scalar_lea.vmem %s1, 48
    %v848 = vld [vmem:[%s847] sm:$0xff]
    %v849 = vld [vmem:[%s847 + $0x8] sm:$0xff]
    %s850 = scalar_lea.vmem %s2, 48
    %v851 = vld [vmem:[%s850] sm:$0xff]
    %v852 = vld [vmem:[%s850 + $0x8] sm:$0xff]
    %s853 = scalar_lea.vmem %s3, 48
    %v854 = vld [vmem:[%s853] sm:$0xff]
    %v855 = vld [vmem:[%s853 + $0x8] sm:$0xff]
    %v857 = vsel %vm242, %v848, 0
    %v860 = vsel %vm242, %v849, 0
    %862 = vmatpush.msra.mxu0 0.0
    %863 = vmatpush.msra.mxu0 0.0
    %864 = vmatpush.msra.mxu0 0.0
    %865 = vmatpush.msra.mxu0 0.0
    %866 = vmatpush.msra.mxu0 0.0
    %867 = vmatpush.msra.mxu0 0.0
    %868 = vmatpush.msra.mxu0 0.0
    %869 = vmatpush.msra.mxu0 0.0
    %870 = vmatpush.msra.mxu0 0.0
    %871 = vmatpush.msra.mxu0 0.0
    %872 = vmatpush.msra.mxu0 %v845
    %873 = vmatpush.msra.mxu0 %v842
    %874 = vmatpush.msra.mxu0 %v820
    %875 = vmatpush.msra.mxu0 %v817
    %876 = vmatpush.msra.mxu0 %v795
    %877 = vmatpush.msra.mxu0 %v792
    %878 = vmatmul.f32.gmra.mxu0 %v857
    %v879 = vpop.f32.mrf.mxu0
    %v880 = vadd.f32 0.0, %v879
    %881 = vmatmul.f32.gmra.mxu0 %v860
    %v882 = vpop.f32.mrf.mxu0
    %v883 = vadd.f32 0.0, %v882
    %884 = vdwg.mxu0
    %vm885 = vcmask 261120
    %v886 = vsel %vm885, %v880, 0.0
    %887 = vadd.xlane.f32.xlu0 %v886
    %v888 = vpop.xlane.xlu0 %887
    %v889 = vsel %vm885, %v883, 0.0
    %890 = vadd.xlane.f32.xlu0 %v889
    %v891 = vpop.xlane.xlu0 %890
    %v892 = vrcp.pop 32.0
    %v893 = vmul.f32 32.0, %v892
    %v894 = vsub.f32 1.0, %v893
    %v895 = vmul.f32 %v892, %v894
    %v896 = vadd.f32 %v892, %v895
    %vm897 = vweird.f32 %v892
    %v898 = vsel %vm897, %v892, %v896
    %v899 = vmul.f32 %v888, %v898
    %v900 = vmul.f32 %v891, %v898
    %v901 = vmul.f32 %v880, %v880
    %v902 = vmul.f32 %v883, %v883
    %v903 = vsel %vm885, %v901, 0.0
    %904 = vadd.xlane.f32.xlu0 %v903
    %v905 = vpop.xlane.xlu0 %904
    %v906 = vsel %vm885, %v902, 0.0
    %907 = vadd.xlane.f32.xlu0 %v906
    %v908 = vpop.xlane.xlu0 %907
    %v909 = vmul.f32 %v905, %v898
    %v910 = vmul.f32 %v908, %v898
    %v911 = vmul.f32 %v899, %v899
    %v912 = vmul.f32 %v900, %v900
    %v913 = vsub.f32 %v909, %v911
    %v914 = vsub.f32 %v910, %v912
    %v915 = vadd.f32 %v913, 1e-05
    %v916 = vadd.f32 %v914, 1e-05
    %v917 = vrsqrt.pop %v915
    %v918 = vmul.f32 %v917, %v915
    %v919 = vmul.f32 %v918, %v917
    %v920 = vmul.f32 0.5, %v919
    %v921 = vsub.f32 1.5, %v920
    %v922 = vmul.f32 %v917, %v921
    %vm923 = vweird.f32 %v915
    %vm924 = vweird.f32 %v917
    %vm925 = vmor %vm923, %vm924
    %v926 = vsel %vm925, %v917, %v922
    %v927 = vrsqrt.pop %v916
    %v928 = vmul.f32 %v927, %v916
    %v929 = vmul.f32 %v928, %v927
    %v930 = vmul.f32 0.5, %v929
    %v931 = vsub.f32 1.5, %v930
    %v932 = vmul.f32 %v927, %v931
    %vm933 = vweird.f32 %v916
    %vm934 = vweird.f32 %v927
    %vm935 = vmor %vm933, %vm934
    %v936 = vsel %vm935, %v927, %v932
    %v937 = vmul.f32 %v926, %v851
    %v938 = vmul.f32 %v936, %v852
    %v939 = vmul.f32 %v899, %v937
    %v940 = vmul.f32 %v900, %v938
    %v941 = vsub.f32 %v854, %v939
    %v942 = vsub.f32 %v855, %v940
    %944 = vset.pattern.permute.xlu0 0
    %945 = vperm.xlu0 %944, %v937
    %v946 = vpop.permute.xlu0 %945
    %949 = vset.pattern.permute.xlu0 0
    %950 = vperm.xlu0 %949, %v938
    %v951 = vpop.permute.xlu0 %950
    %v953 = vmul.f32 %v880, %v946
    %v954 = vmul.f32 %v883, %v951
    %956 = vset.pattern.permute.xlu0 0
    %957 = vperm.xlu0 %956, %v941
    %v958 = vpop.permute.xlu0 %957
    %961 = vset.pattern.permute.xlu0 0
    %962 = vperm.xlu0 %961, %v942
    %v963 = vpop.permute.xlu0 %962
    %v965 = vadd.f32 %v953, %v958
    %v966 = vadd.f32 %v954, %v963
    %v967 = vmax.f32 %v965, 0.0
    %v968 = vmax.f32 %v966, 0.0
    %v969 = vld [vmem:[#allocation14] sm:$0xff]
    %v970 = vld [vmem:[#allocation14 + $0x8] sm:$0xff]
    %v971 = vld [vmem:[#allocation14 + $0x10] sm:$0xff]
    %v972 = vld [vmem:[#allocation14 + $0x18] sm:$0xff]
    %v974 = vsel %vm885, %v967, 0
    %v977 = vsel %vm885, %v968, 0
    %979 = vmatpush.msra.mxu0 0.0
    %980 = vmatpush.msra.mxu0 0.0
    %981 = vmatpush.msra.mxu0 0.0
    %982 = vmatpush.msra.mxu0 0.0
    %983 = vmatpush.msra.mxu0 0.0
    %984 = vmatpush.msra.mxu0 0.0
    %985 = vmatpush.msra.mxu0 0.0
    %986 = vmatpush.msra.mxu0 0.0
    %987 = vmatpush.msra.mxu0 0.0
    %988 = vmatpush.msra.mxu0 0.0
    %989 = vmatpush.msra.mxu0 0.0
    %990 = vmatpush.msra.mxu0 0.0
    %991 = vmatpush.msra.mxu0 %v972
    %992 = vmatpush.msra.mxu0 %v971
    %993 = vmatpush.msra.mxu0 %v970
    %994 = vmatpush.msra.mxu0 %v969
    %995 = vmatmul.f32.gmra.mxu0 %v974
    %v996 = vpop.f32.mrf.mxu0
    %v997 = vadd.f32 0.0, %v996
    %998 = vmatmul.f32.gmra.mxu0 %v977
    %v999 = vpop.f32.mrf.mxu0
    %v1000 = vadd.f32 0.0, %v999
    %1001 = vdwg.mxu0
    %v1002 = vld [vmem:[#allocation16] sm:$0xff]
    %v1003 = vld [vmem:[#allocation16 + $0x8] sm:$0xff]
    %v1004 = vld [vmem:[#allocation16 + $0x10] sm:$0xff]
    %v1005 = vld [vmem:[#allocation16 + $0x18] sm:$0xff]
    %1006 = vmatpush.msra.mxu0 0.0
    %1007 = vmatpush.msra.mxu0 0.0
    %1008 = vmatpush.msra.mxu0 0.0
    %1009 = vmatpush.msra.mxu0 0.0
    %1010 = vmatpush.msra.mxu0 0.0
    %1011 = vmatpush.msra.mxu0 0.0
    %1012 = vmatpush.msra.mxu0 0.0
    %1013 = vmatpush.msra.mxu0 0.0
    %1014 = vmatpush.msra.mxu0 0.0
    %1015 = vmatpush.msra.mxu0 0.0
    %1016 = vmatpush.msra.mxu0 0.0
    %1017 = vmatpush.msra.mxu0 0.0
    %1018 = vmatpush.msra.mxu0 %v1005
    %1019 = vmatpush.msra.mxu0 %v1004
    %1020 = vmatpush.msra.mxu0 %v1003
    %1021 = vmatpush.msra.mxu0 %v1002
    %1022 = vmatmul.f32.gmra.mxu0 %v974
    %v1023 = vpop.f32.mrf.mxu0
    %v1024 = vadd.f32 0.0, %v1023
    %1025 = vmatmul.f32.gmra.mxu0 %v977
    %v1026 = vpop.f32.mrf.mxu0
    %v1027 = vadd.f32 0.0, %v1026
    %1028 = vdwg.mxu0
    %v1029 = vld [vmem:[#allocation17] sm:$0xff]
    %v1030 = vld [vmem:[#allocation17 + $0x8] sm:$0xff]
    %v1031 = vld [vmem:[#allocation17 + $0x10] sm:$0xff]
    %v1032 = vld [vmem:[#allocation17 + $0x18] sm:$0xff]
    %1033 = vmatpush.msra.mxu0 0.0
    %1034 = vmatpush.msra.mxu0 0.0
    %1035 = vmatpush.msra.mxu0 0.0
    %1036 = vmatpush.msra.mxu0 0.0
    %1037 = vmatpush.msra.mxu0 0.0
    %1038 = vmatpush.msra.mxu0 0.0
    %1039 = vmatpush.msra.mxu0 0.0
    %1040 = vmatpush.msra.mxu0 0.0
    %1041 = vmatpush.msra.mxu0 0.0
    %1042 = vmatpush.msra.mxu0 0.0
    %1043 = vmatpush.msra.mxu0 0.0
    %1044 = vmatpush.msra.mxu0 0.0
    %1045 = vmatpush.msra.mxu0 %v1032
    %1046 = vmatpush.msra.mxu0 %v1031
    %1047 = vmatpush.msra.mxu0 %v1030
    %1048 = vmatpush.msra.mxu0 %v1029
    %1049 = vmatmul.f32.gmra.mxu0 %v974
    %v1050 = vpop.f32.mrf.mxu0
    %v1051 = vadd.f32 0.0, %v1050
    %1052 = vmatmul.f32.gmra.mxu0 %v977
    %v1053 = vpop.f32.mrf.mxu0
    %v1054 = vadd.f32 0.0, %v1053
    %1055 = vdwg.mxu0
    %s1056 = scalar_lea.vmem %s1, 64
    %v1057 = vld [vmem:[%s1056] sm:$0xff]
    %v1058 = vld [vmem:[%s1056 + $0x8] sm:$0xff]
    %s1059 = scalar_lea.vmem %s2, 64
    %v1060 = vld [vmem:[%s1059] sm:$0xff]
    %v1061 = vld [vmem:[%s1059 + $0x8] sm:$0xff]
    %s1062 = scalar_lea.vmem %s3, 64
    %v1063 = vld [vmem:[%s1062] sm:$0xff]
    %v1064 = vld [vmem:[%s1062 + $0x8] sm:$0xff]
    %v1066 = vsel %vm242, %v1057, 0
    %v1069 = vsel %vm242, %v1058, 0
    %1071 = vmatpush.msra.mxu0 0.0
    %1072 = vmatpush.msra.mxu0 0.0
    %1073 = vmatpush.msra.mxu0 0.0
    %1074 = vmatpush.msra.mxu0 0.0
    %1075 = vmatpush.msra.mxu0 0.0
    %1076 = vmatpush.msra.mxu0 0.0
    %1077 = vmatpush.msra.mxu0 0.0
    %1078 = vmatpush.msra.mxu0 0.0
    %1079 = vmatpush.msra.mxu0 0.0
    %1080 = vmatpush.msra.mxu0 0.0
    %1081 = vmatpush.msra.mxu0 %v1054
    %1082 = vmatpush.msra.mxu0 %v1051
    %1083 = vmatpush.msra.mxu0 %v1027
    %1084 = vmatpush.msra.mxu0 %v1024
    %1085 = vmatpush.msra.mxu0 %v1000
    %1086 = vmatpush.msra.mxu0 %v997
    %1087 = vmatmul.f32.gmra.mxu0 %v1066
    %v1088 = vpop.f32.mrf.mxu0
    %v1089 = vadd.f32 0.0, %v1088
    %1090 = vmatmul.f32.gmra.mxu0 %v1069
    %v1091 = vpop.f32.mrf.mxu0
    %v1092 = vadd.f32 0.0, %v1091
    %1093 = vdwg.mxu0
    %vm1094 = vcmask 523264
    %v1095 = vsel %vm1094, %v1089, 0.0
    %1096 = vadd.xlane.f32.xlu0 %v1095
    %v1097 = vpop.xlane.xlu0 %1096
    %v1098 = vsel %vm1094, %v1092, 0.0
    %1099 = vadd.xlane.f32.xlu0 %v1098
    %v1100 = vpop.xlane.xlu0 %1099
    %v1101 = vrcp.pop 64.0
    %v1102 = vmul.f32 64.0, %v1101
    %v1103 = vsub.f32 1.0, %v1102
    %v1104 = vmul.f32 %v1101, %v1103
    %v1105 = vadd.f32 %v1101, %v1104
    %vm1106 = vweird.f32 %v1101
    %v1107 = vsel %vm1106, %v1101, %v1105
    %v1108 = vmul.f32 %v1097, %v1107
    %v1109 = vmul.f32 %v1100, %v1107
    %v1110 = vmul.f32 %v1089, %v1089
    %v1111 = vmul.f32 %v1092, %v1092
    %v1112 = vsel %vm1094, %v1110, 0.0
    %1113 = vadd.xlane.f32.xlu0 %v1112
    %v1114 = vpop.xlane.xlu0 %1113
    %v1115 = vsel %vm1094, %v1111, 0.0
    %1116 = vadd.xlane.f32.xlu0 %v1115
    %v1117 = vpop.xlane.xlu0 %1116
    %v1118 = vmul.f32 %v1114, %v1107
    %v1119 = vmul.f32 %v1117, %v1107
    %v1120 = vmul.f32 %v1108, %v1108
    %v1121 = vmul.f32 %v1109, %v1109
    %v1122 = vsub.f32 %v1118, %v1120
    %v1123 = vsub.f32 %v1119, %v1121
    %v1124 = vadd.f32 %v1122, 1e-05
    %v1125 = vadd.f32 %v1123, 1e-05
    %v1126 = vrsqrt.pop %v1124
    %v1127 = vmul.f32 %v1126, %v1124
    %v1128 = vmul.f32 %v1127, %v1126
    %v1129 = vmul.f32 0.5, %v1128
    %v1130 = vsub.f32 1.5, %v1129
    %v1131 = vmul.f32 %v1126, %v1130
    %vm1132 = vweird.f32 %v1124
    %vm1133 = vweird.f32 %v1126
    %vm1134 = vmor %vm1132, %vm1133
    %v1135 = vsel %vm1134, %v1126, %v1131
    %v1136 = vrsqrt.pop %v1125
    %v1137 = vmul.f32 %v1136, %v1125
    %v1138 = vmul.f32 %v1137, %v1136
    %v1139 = vmul.f32 0.5, %v1138
    %v1140 = vsub.f32 1.5, %v1139
    %v1141 = vmul.f32 %v1136, %v1140
    %vm1142 = vweird.f32 %v1125
    %vm1143 = vweird.f32 %v1136
    %vm1144 = vmor %vm1142, %vm1143
    %v1145 = vsel %vm1144, %v1136, %v1141
    %v1146 = vmul.f32 %v1135, %v1060
    %v1147 = vmul.f32 %v1145, %v1061
    %v1148 = vmul.f32 %v1108, %v1146
    %v1149 = vmul.f32 %v1109, %v1147
    %v1150 = vsub.f32 %v1063, %v1148
    %v1151 = vsub.f32 %v1064, %v1149
    %1153 = vset.pattern.permute.xlu0 0
    %1154 = vperm.xlu0 %1153, %v1146
    %v1155 = vpop.permute.xlu0 %1154
    %1158 = vset.pattern.permute.xlu0 0
    %1159 = vperm.xlu0 %1158, %v1147
    %v1160 = vpop.permute.xlu0 %1159
    %v1162 = vmul.f32 %v1089, %v1155
    %v1163 = vmul.f32 %v1092, %v1160
    %1165 = vset.pattern.permute.xlu0 0
    %1166 = vperm.xlu0 %1165, %v1150
    %v1167 = vpop.permute.xlu0 %1166
    %1170 = vset.pattern.permute.xlu0 0
    %1171 = vperm.xlu0 %1170, %v1151
    %v1172 = vpop.permute.xlu0 %1171
    %v1174 = vadd.f32 %v1162, %v1167
    %v1175 = vadd.f32 %v1163, %v1172
    %v1176 = vmax.f32 %v1174, 0.0
    %v1177 = vmax.f32 %v1175, 0.0
    %v1178 = vld [vmem:[%s19] sm:$0xff]
    %v1179 = vld [vmem:[%s19 + $0x8] sm:$0xff]
    %v1180 = vld [vmem:[%s19 + $0x10] sm:$0xff]
    %v1181 = vld [vmem:[%s19 + $0x18] sm:$0xff]
    %v1182 = vld [vmem:[%s19 + $0x20] sm:$0xff]
    %v1183 = vld [vmem:[%s19 + $0x28] sm:$0xff]
    %v1184 = vld [vmem:[%s19 + $0x30] sm:$0xff]
    %v1185 = vld [vmem:[%s19 + $0x38] sm:$0xff]
    %v1186 = vld [vmem:[%s19 + $0x40] sm:$0xff]
    %v1187 = vld [vmem:[%s19 + $0x48] sm:$0xff]
    %v1188 = vld [vmem:[%s19 + $0x50] sm:$0xff]
    %v1189 = vld [vmem:[%s19 + $0x58] sm:$0xff]
    %v1190 = vld [vmem:[%s19 + $0x60] sm:$0xff]
    %v1191 = vld [vmem:[%s19 + $0x68] sm:$0xff]
    %v1192 = vld [vmem:[%s19 + $0x70] sm:$0xff]
    %v1193 = vld [vmem:[%s19 + $0x78] sm:$0xff]
    %v1194 = vld [vmem:[%s19 + $0x80] sm:$0xff]
    %v1195 = vld [vmem:[%s19 + $0x88] sm:$0xff]
    %v1196 = vld [vmem:[%s19 + $0x90] sm:$0xff]
    %v1197 = vld [vmem:[%s19 + $0x98] sm:$0xff]
    %v1198 = vld [vmem:[%s19 + $0xa0] sm:$0xff]
    %v1199 = vld [vmem:[%s19 + $0xa8] sm:$0xff]
    %v1200 = vld [vmem:[%s19 + $0xb0] sm:$0xff]
    %v1201 = vld [vmem:[%s19 + $0xb8] sm:$0xff]
    %v1203 = vsel %vm1094, %v1176, 0
    %v1206 = vsel %vm1094, %v1177, 0
    %1208 = vmatpush.msra.mxu0 0.0
    %1209 = vmatpush.msra.mxu0 0.0
    %1210 = vmatpush.msra.mxu0 0.0
    %1211 = vmatpush.msra.mxu0 0.0
    %1212 = vmatpush.msra.mxu0 0.0
    %1213 = vmatpush.msra.mxu0 0.0
    %1214 = vmatpush.msra.mxu0 0.0
    %1215 = vmatpush.msra.mxu0 0.0
    %1216 = vmatpush.msra.mxu0 %v1199
    %1217 = vmatpush.msra.mxu0 %v1196
    %1218 = vmatpush.msra.mxu0 %v1193
    %1219 = vmatpush.msra.mxu0 %v1190
    %1220 = vmatpush.msra.mxu0 %v1187
    %1221 = vmatpush.msra.mxu0 %v1184
    %1222 = vmatpush.msra.mxu0 %v1181
    %1223 = vmatpush.msra.mxu0 %v1178
    %1224 = vmatmul.f32.gmra.mxu0 %v1203
    %v1225 = vpop.f32.mrf.mxu0
    %v1226 = vadd.f32 0.0, %v1225
    %1227 = vmatmul.f32.gmra.mxu0 %v1206
    %v1228 = vpop.f32.mrf.mxu0
    %v1229 = vadd.f32 0.0, %v1228
    %1230 = vdwg.mxu0
    %1231 = vmatpush.msra.mxu0 0.0
    %1232 = vmatpush.msra.mxu0 0.0
    %1233 = vmatpush.msra.mxu0 0.0
    %1234 = vmatpush.msra.mxu0 0.0
    %1235 = vmatpush.msra.mxu0 0.0
    %1236 = vmatpush.msra.mxu0 0.0
    %1237 = vmatpush.msra.mxu0 0.0
    %1238 = vmatpush.msra.mxu0 0.0
    %1239 = vmatpush.msra.mxu0 %v1200
    %1240 = vmatpush.msra.mxu0 %v1197
    %1241 = vmatpush.msra.mxu0 %v1194
    %1242 = vmatpush.msra.mxu0 %v1191
    %1243 = vmatpush.msra.mxu0 %v1188
    %1244 = vmatpush.msra.mxu0 %v1185
    %1245 = vmatpush.msra.mxu0 %v1182
    %1246 = vmatpush.msra.mxu0 %v1179
    %1247 = vmatmul.f32.gmra.mxu0 %v1203
    %v1248 = vpop.f32.mrf.mxu0
    %v1249 = vadd.f32 0.0, %v1248
    %1250 = vmatmul.f32.gmra.mxu0 %v1206
    %v1251 = vpop.f32.mrf.mxu0
    %v1252 = vadd.f32 0.0, %v1251
    %1253 = vdwg.mxu0
    %1254 = vmatpush.msra.mxu0 0.0
    %1255 = vmatpush.msra.mxu0 0.0
    %1256 = vmatpush.msra.mxu0 0.0
    %1257 = vmatpush.msra.mxu0 0.0
    %1258 = vmatpush.msra.mxu0 0.0
    %1259 = vmatpush.msra.mxu0 0.0
    %1260 = vmatpush.msra.mxu0 0.0
    %1261 = vmatpush.msra.mxu0 0.0
    %1262 = vmatpush.msra.mxu0 %v1201
    %1263 = vmatpush.msra.mxu0 %v1198
    %1264 = vmatpush.msra.mxu0 %v1195
    %1265 = vmatpush.msra.mxu0 %v1192
    %1266 = vmatpush.msra.mxu0 %v1189
    %1267 = vmatpush.msra.mxu0 %v1186
    %1268 = vmatpush.msra.mxu0 %v1183
    %1269 = vmatpush.msra.mxu0 %v1180
    %1270 = vmatmul.f32.gmra.mxu0 %v1203
    %v1271 = vpop.f32.mrf.mxu0
    %v1272 = vadd.f32 0.0, %v1271
    %1273 = vmatmul.f32.gmra.mxu0 %v1206
    %v1274 = vpop.f32.mrf.mxu0
    %v1275 = vadd.f32 0.0, %v1274
    %1276 = vdwg.mxu0
    %s1277 = scalar_lea.vmem %s1, 80
    %v1278 = vld [vmem:[%s1277] sm:$0xff]
    %v1279 = vld [vmem:[%s1277 + $0x8] sm:$0xff]
    %s1280 = scalar_lea.vmem %s2, 80
    %v1281 = vld [vmem:[%s1280] sm:$0xff]
    %v1282 = vld [vmem:[%s1280 + $0x8] sm:$0xff]
    %s1283 = scalar_lea.vmem %s3, 80
    %v1284 = vld [vmem:[%s1283] sm:$0xff]
    %v1285 = vld [vmem:[%s1283 + $0x8] sm:$0xff]
    %v1287 = vsel %vm242, %v1278, 0
    %v1290 = vsel %vm242, %v1279, 0
    %1292 = vmatpush.msra.mxu0 0.0
    %1293 = vmatpush.msra.mxu0 0.0
    %1294 = vmatpush.msra.mxu0 0.0
    %1295 = vmatpush.msra.mxu0 0.0
    %1296 = vmatpush.msra.mxu0 0.0
    %1297 = vmatpush.msra.mxu0 0.0
    %1298 = vmatpush.msra.mxu0 0.0
    %1299 = vmatpush.msra.mxu0 0.0
    %1300 = vmatpush.msra.mxu0 0.0
    %1301 = vmatpush.msra.mxu0 0.0
    %1302 = vmatpush.msra.mxu0 %v1275
    %1303 = vmatpush.msra.mxu0 %v1272
    %1304 = vmatpush.msra.mxu0 %v1252
    %1305 = vmatpush.msra.mxu0 %v1249
    %1306 = vmatpush.msra.mxu0 %v1229
    %1307 = vmatpush.msra.mxu0 %v1226
    %1308 = vmatmul.f32.gmra.mxu0 %v1287
    %v1309 = vpop.f32.mrf.mxu0
    %v1310 = vadd.f32 0.0, %v1309
    %1311 = vmatmul.f32.gmra.mxu0 %v1290
    %v1312 = vpop.f32.mrf.mxu0
    %v1313 = vadd.f32 0.0, %v1312
    %1314 = vdwg.mxu0
    %1315 = vadd.xlane.f32.xlu0 %v1310
    %v1316 = vpop.xlane.xlu0 %1315
    %1317 = vadd.xlane.f32.xlu0 %v1313
    %v1318 = vpop.xlane.xlu0 %1317
    %v1319 = vrcp.pop 128.0
    %v1320 = vmul.f32 128.0, %v1319
    %v1321 = vsub.f32 1.0, %v1320
    %v1322 = vmul.f32 %v1319, %v1321
    %v1323 = vadd.f32 %v1319, %v1322
    %vm1324 = vweird.f32 %v1319
    %v1325 = vsel %vm1324, %v1319, %v1323
    %v1326 = vmul.f32 %v1316, %v1325
    %v1327 = vmul.f32 %v1318, %v1325
    %v1328 = vmul.f32 %v1310, %v1310
    %v1329 = vmul.f32 %v1313, %v1313
    %1330 = vadd.xlane.f32.xlu0 %v1328
    %v1331 = vpop.xlane.xlu0 %1330
    %1332 = vadd.xlane.f32.xlu0 %v1329
    %v1333 = vpop.xlane.xlu0 %1332
    %v1334 = vmul.f32 %v1331, %v1325
    %v1335 = vmul.f32 %v1333, %v1325
    %v1336 = vmul.f32 %v1326, %v1326
    %v1337 = vmul.f32 %v1327, %v1327
    %v1338 = vsub.f32 %v1334, %v1336
    %v1339 = vsub.f32 %v1335, %v1337
    %v1340 = vadd.f32 %v1338, 1e-05
    %v1341 = vadd.f32 %v1339, 1e-05
    %v1342 = vrsqrt.pop %v1340
    %v1343 = vmul.f32 %v1342, %v1340
    %v1344 = vmul.f32 %v1343, %v1342
    %v1345 = vmul.f32 0.5, %v1344
    %v1346 = vsub.f32 1.5, %v1345
    %v1347 = vmul.f32 %v1342, %v1346
    %vm1348 = vweird.f32 %v1340
    %vm1349 = vweird.f32 %v1342
    %vm1350 = vmor %vm1348, %vm1349
    %v1351 = vsel %vm1350, %v1342, %v1347
    %v1352 = vrsqrt.pop %v1341
    %v1353 = vmul.f32 %v1352, %v1341
    %v1354 = vmul.f32 %v1353, %v1352
    %v1355 = vmul.f32 0.5, %v1354
    %v1356 = vsub.f32 1.5, %v1355
    %v1357 = vmul.f32 %v1352, %v1356
    %vm1358 = vweird.f32 %v1341
    %vm1359 = vweird.f32 %v1352
    %vm1360 = vmor %vm1358, %vm1359
    %v1361 = vsel %vm1360, %v1352, %v1357
    %v1362 = vmul.f32 %v1351, %v1281
    %v1363 = vmul.f32 %v1361, %v1282
    %v1364 = vmul.f32 %v1326, %v1362
    %v1365 = vmul.f32 %v1327, %v1363
    %v1366 = vsub.f32 %v1284, %v1364
    %v1367 = vsub.f32 %v1285, %v1365
    %1369 = vset.pattern.permute.xlu0 0
    %1370 = vperm.xlu0 %1369, %v1362
    %v1371 = vpop.permute.xlu0 %1370
    %1374 = vset.pattern.permute.xlu0 0
    %1375 = vperm.xlu0 %1374, %v1363
    %v1376 = vpop.permute.xlu0 %1375
    %v1378 = vmul.f32 %v1310, %v1371
    %v1379 = vmul.f32 %v1313, %v1376
    %1381 = vset.pattern.permute.xlu0 0
    %1382 = vperm.xlu0 %1381, %v1366
    %v1383 = vpop.permute.xlu0 %1382
    %1386 = vset.pattern.permute.xlu0 0
    %1387 = vperm.xlu0 %1386, %v1367
    %v1388 = vpop.permute.xlu0 %1387
    %v1390 = vadd.f32 %v1378, %v1383
    %v1391 = vadd.f32 %v1379, %v1388
    %v1392 = vmax.f32 %v1390, 0.0
    %v1393 = vmax.f32 %v1391, 0.0
    %v1394 = vld [vmem:[#allocation19] sm:$0xff]
    %v1395 = vld [vmem:[#allocation19 + $0x8] sm:$0xff]
    %v1396 = vld [vmem:[#allocation19 + $0x10] sm:$0xff]
    %v1397 = vld [vmem:[#allocation19 + $0x18] sm:$0xff]
    %v1398 = vld [vmem:[#allocation19 + $0x20] sm:$0xff]
    %v1399 = vld [vmem:[#allocation19 + $0x28] sm:$0xff]
    %v1400 = vld [vmem:[#allocation19 + $0x30] sm:$0xff]
    %v1401 = vld [vmem:[#allocation19 + $0x38] sm:$0xff]
    %v1402 = vld [vmem:[#allocation19 + $0x40] sm:$0xff]
    %v1403 = vld [vmem:[#allocation19 + $0x48] sm:$0xff]
    %v1404 = vld [vmem:[#allocation19 + $0x50] sm:$0xff]
    %v1405 = vld [vmem:[#allocation19 + $0x58] sm:$0xff]
    %v1406 = vld [vmem:[#allocation19 + $0x60] sm:$0xff]
    %v1407 = vld [vmem:[#allocation19 + $0x68] sm:$0xff]
    %v1408 = vld [vmem:[#allocation19 + $0x70] sm:$0xff]
    %v1409 = vld [vmem:[#allocation19 + $0x78] sm:$0xff]
    %v1410 = vld [vmem:[#allocation19 + $0x80] sm:$0xff]
    %v1411 = vld [vmem:[#allocation19 + $0x88] sm:$0xff]
    %v1412 = vld [vmem:[#allocation19 + $0x90] sm:$0xff]
    %v1413 = vld [vmem:[#allocation19 + $0x98] sm:$0xff]
    %v1414 = vld [vmem:[#allocation19 + $0xa0] sm:$0xff]
    %v1415 = vld [vmem:[#allocation19 + $0xa8] sm:$0xff]
    %v1416 = vld [vmem:[#allocation19 + $0xb0] sm:$0xff]
    %v1417 = vld [vmem:[#allocation19 + $0xb8] sm:$0xff]
    %v1418 = vld [vmem:[#allocation19 + $0xc0] sm:$0xff]
    %v1419 = vld [vmem:[#allocation19 + $0xc8] sm:$0xff]
    %v1420 = vld [vmem:[#allocation19 + $0xd0] sm:$0xff]
    %v1421 = vld [vmem:[#allocation19 + $0xd8] sm:$0xff]
    %v1422 = vld [vmem:[#allocation19 + $0xe0] sm:$0xff]
    %v1423 = vld [vmem:[#allocation19 + $0xe8] sm:$0xff]
    %v1424 = vld [vmem:[#allocation19 + $0xf0] sm:$0xff]
    %v1425 = vld [vmem:[#allocation19 + $0xf8] sm:$0xff]
    %v1426 = vld [vmem:[#allocation19 + $0x100] sm:$0xff]
    %v1427 = vld [vmem:[#allocation19 + $0x108] sm:$0xff]
    %v1428 = vld [vmem:[#allocation19 + $0x110] sm:$0xff]
    %v1429 = vld [vmem:[#allocation19 + $0x118] sm:$0xff]
    %v1430 = vld [vmem:[#allocation19 + $0x120] sm:$0xff]
    %v1431 = vld [vmem:[#allocation19 + $0x128] sm:$0xff]
    %v1432 = vld [vmem:[#allocation19 + $0x130] sm:$0xff]
    %v1433 = vld [vmem:[#allocation19 + $0x138] sm:$0xff]
    %v1434 = vld [vmem:[#allocation19 + $0x140] sm:$0xff]
    %v1435 = vld [vmem:[#allocation19 + $0x148] sm:$0xff]
    %v1436 = vld [vmem:[#allocation19 + $0x150] sm:$0xff]
    %v1437 = vld [vmem:[#allocation19 + $0x158] sm:$0xff]
    %v1438 = vld [vmem:[#allocation19 + $0x160] sm:$0xff]
    %v1439 = vld [vmem:[#allocation19 + $0x168] sm:$0xff]
    %v1440 = vld [vmem:[#allocation19 + $0x170] sm:$0xff]
    %v1441 = vld [vmem:[#allocation19 + $0x178] sm:$0xff]
    %v1442 = vld [vmem:[#allocation19 + $0x180] sm:$0xff]
    %v1443 = vld [vmem:[#allocation19 + $0x188] sm:$0xff]
    %v1444 = vld [vmem:[#allocation19 + $0x190] sm:$0xff]
    %v1445 = vld [vmem:[#allocation19 + $0x198] sm:$0xff]
    %v1446 = vld [vmem:[#allocation19 + $0x1a0] sm:$0xff]
    %v1447 = vld [vmem:[#allocation19 + $0x1a8] sm:$0xff]
    %v1448 = vld [vmem:[#allocation19 + $0x1b0] sm:$0xff]
    %v1449 = vld [vmem:[#allocation19 + $0x1b8] sm:$0xff]
    %v1450 = vld [vmem:[#allocation19 + $0x1c0] sm:$0xff]
    %v1451 = vld [vmem:[#allocation19 + $0x1c8] sm:$0xff]
    %v1452 = vld [vmem:[#allocation19 + $0x1d0] sm:$0xff]
    %v1453 = vld [vmem:[#allocation19 + $0x1d8] sm:$0xff]
    %v1454 = vld [vmem:[#allocation19 + $0x1e0] sm:$0xff]
    %v1455 = vld [vmem:[#allocation19 + $0x1e8] sm:$0xff]
    %v1456 = vld [vmem:[#allocation19 + $0x1f0] sm:$0xff]
    %v1457 = vld [vmem:[#allocation19 + $0x1f8] sm:$0xff]
    %v1458 = vld [vmem:[#allocation19 + $0x200] sm:$0xff]
    %v1459 = vld [vmem:[#allocation19 + $0x208] sm:$0xff]
    %v1460 = vld [vmem:[#allocation19 + $0x210] sm:$0xff]
    %v1461 = vld [vmem:[#allocation19 + $0x218] sm:$0xff]
    %v1462 = vld [vmem:[#allocation19 + $0x220] sm:$0xff]
    %v1463 = vld [vmem:[#allocation19 + $0x228] sm:$0xff]
    %v1464 = vld [vmem:[#allocation19 + $0x230] sm:$0xff]
    %v1465 = vld [vmem:[#allocation19 + $0x238] sm:$0xff]
    %v1466 = vld [vmem:[#allocation19 + $0x240] sm:$0xff]
    %v1467 = vld [vmem:[#allocation19 + $0x248] sm:$0xff]
    %v1468 = vld [vmem:[#allocation19 + $0x250] sm:$0xff]
    %v1469 = vld [vmem:[#allocation19 + $0x258] sm:$0xff]
    %v1470 = vld [vmem:[#allocation19 + $0x260] sm:$0xff]
    %v1471 = vld [vmem:[#allocation19 + $0x268] sm:$0xff]
    %v1472 = vld [vmem:[#allocation19 + $0x270] sm:$0xff]
    %v1473 = vld [vmem:[#allocation19 + $0x278] sm:$0xff]
    %v1474 = vld [vmem:[#allocation19 + $0x280] sm:$0xff]
    %v1475 = vld [vmem:[#allocation19 + $0x288] sm:$0xff]
    %v1476 = vld [vmem:[#allocation19 + $0x290] sm:$0xff]
    %v1477 = vld [vmem:[#allocation19 + $0x298] sm:$0xff]
    %v1478 = vld [vmem:[#allocation19 + $0x2a0] sm:$0xff]
    %v1479 = vld [vmem:[#allocation19 + $0x2a8] sm:$0xff]
    %v1480 = vld [vmem:[#allocation19 + $0x2b0] sm:$0xff]
    %v1481 = vld [vmem:[#allocation19 + $0x2b8] sm:$0xff]
    %v1482 = vld [vmem:[#allocation19 + $0x2c0] sm:$0xff]
    %v1483 = vld [vmem:[#allocation19 + $0x2c8] sm:$0xff]
    %v1484 = vld [vmem:[#allocation19 + $0x2d0] sm:$0xff]
    %v1485 = vld [vmem:[#allocation19 + $0x2d8] sm:$0xff]
    %v1486 = vld [vmem:[#allocation19 + $0x2e0] sm:$0xff]
    %v1487 = vld [vmem:[#allocation19 + $0x2e8] sm:$0xff]
    %v1488 = vld [vmem:[#allocation19 + $0x2f0] sm:$0xff]
    %v1489 = vld [vmem:[#allocation19 + $0x2f8] sm:$0xff]
    %1490 = vmatpush.msra.mxu0 %v1484
    %1491 = vmatpush.msra.mxu0 %v1478
    %1492 = vmatpush.msra.mxu0 %v1472
    %1493 = vmatpush.msra.mxu0 %v1466
    %1494 = vmatpush.msra.mxu0 %v1460
    %1495 = vmatpush.msra.mxu0 %v1454
    %1496 = vmatpush.msra.mxu0 %v1448
    %1497 = vmatpush.msra.mxu0 %v1442
    %1498 = vmatpush.msra.mxu0 %v1436
    %1499 = vmatpush.msra.mxu0 %v1430
    %1500 = vmatpush.msra.mxu0 %v1424
    %1501 = vmatpush.msra.mxu0 %v1418
    %1502 = vmatpush.msra.mxu0 %v1412
    %1503 = vmatpush.msra.mxu0 %v1406
    %1504 = vmatpush.msra.mxu0 %v1400
    %1505 = vmatpush.msra.mxu0 %v1394
    %1506 = vmatmul.f32.gmra.mxu0 %v1392
    %v1507 = vpop.f32.mrf.mxu0
    %v1508 = vadd.f32 0.0, %v1507
    %1509 = vmatmul.f32.gmra.mxu0 %v1393
    %v1510 = vpop.f32.mrf.mxu0
    %v1511 = vadd.f32 0.0, %v1510
    %1512 = vdwg.mxu0
    %1513 = vmatpush.msra.mxu0 %v1485
    %1514 = vmatpush.msra.mxu0 %v1479
    %1515 = vmatpush.msra.mxu0 %v1473
    %1516 = vmatpush.msra.mxu0 %v1467
    %1517 = vmatpush.msra.mxu0 %v1461
    %1518 = vmatpush.msra.mxu0 %v1455
    %1519 = vmatpush.msra.mxu0 %v1449
    %1520 = vmatpush.msra.mxu0 %v1443
    %1521 = vmatpush.msra.mxu0 %v1437
    %1522 = vmatpush.msra.mxu0 %v1431
    %1523 = vmatpush.msra.mxu0 %v1425
    %1524 = vmatpush.msra.mxu0 %v1419
    %1525 = vmatpush.msra.mxu0 %v1413
    %1526 = vmatpush.msra.mxu0 %v1407
    %1527 = vmatpush.msra.mxu0 %v1401
    %1528 = vmatpush.msra.mxu0 %v1395
    %1529 = vmatmul.f32.gmra.mxu0 %v1392
    %v1530 = vpop.f32.mrf.mxu0
    %v1531 = vadd.f32 0.0, %v1530
    %1532 = vmatmul.f32.gmra.mxu0 %v1393
    %v1533 = vpop.f32.mrf.mxu0
    %v1534 = vadd.f32 0.0, %v1533
    %1535 = vdwg.mxu0
    %1536 = vmatpush.msra.mxu0 %v1486
    %1537 = vmatpush.msra.mxu0 %v1480
    %1538 = vmatpush.msra.mxu0 %v1474
    %1539 = vmatpush.msra.mxu0 %v1468
    %1540 = vmatpush.msra.mxu0 %v1462
    %1541 = vmatpush.msra.mxu0 %v1456
    %1542 = vmatpush.msra.mxu0 %v1450
    %1543 = vmatpush.msra.mxu0 %v1444
    %1544 = vmatpush.msra.mxu0 %v1438
    %1545 = vmatpush.msra.mxu0 %v1432
    %1546 = vmatpush.msra.mxu0 %v1426
    %1547 = vmatpush.msra.mxu0 %v1420
    %1548 = vmatpush.msra.mxu0 %v1414
    %1549 = vmatpush.msra.mxu0 %v1408
    %1550 = vmatpush.msra.mxu0 %v1402
    %1551 = vmatpush.msra.mxu0 %v1396
    %1552 = vmatmul.f32.gmra.mxu0 %v1392
    %v1553 = vpop.f32.mrf.mxu0
    %v1554 = vadd.f32 0.0, %v1553
    %1555 = vmatmul.f32.gmra.mxu0 %v1393
    %v1556 = vpop.f32.mrf.mxu0
    %v1557 = vadd.f32 0.0, %v1556
    %1558 = vdwg.mxu0
    %1559 = vmatpush.msra.mxu0 %v1487
    %1560 = vmatpush.msra.mxu0 %v1481
    %1561 = vmatpush.msra.mxu0 %v1475
    %1562 = vmatpush.msra.mxu0 %v1469
    %1563 = vmatpush.msra.mxu0 %v1463
    %1564 = vmatpush.msra.mxu0 %v1457
    %1565 = vmatpush.msra.mxu0 %v1451
    %1566 = vmatpush.msra.mxu0 %v1445
    %1567 = vmatpush.msra.mxu0 %v1439
    %1568 = vmatpush.msra.mxu0 %v1433
    %1569 = vmatpush.msra.mxu0 %v1427
    %1570 = vmatpush.msra.mxu0 %v1421
    %1571 = vmatpush.msra.mxu0 %v1415
    %1572 = vmatpush.msra.mxu0 %v1409
    %1573 = vmatpush.msra.mxu0 %v1403
    %1574 = vmatpush.msra.mxu0 %v1397
    %1575 = vmatmul.f32.gmra.mxu0 %v1392
    %v1576 = vpop.f32.mrf.mxu0
    %v1577 = vadd.f32 0.0, %v1576
    %1578 = vmatmul.f32.gmra.mxu0 %v1393
    %v1579 = vpop.f32.mrf.mxu0
    %v1580 = vadd.f32 0.0, %v1579
    %1581 = vdwg.mxu0
    %1582 = vmatpush.msra.mxu0 %v1488
    %1583 = vmatpush.msra.mxu0 %v1482
    %1584 = vmatpush.msra.mxu0 %v1476
    %1585 = vmatpush.msra.mxu0 %v1470
    %1586 = vmatpush.msra.mxu0 %v1464
    %1587 = vmatpush.msra.mxu0 %v1458
    %1588 = vmatpush.msra.mxu0 %v1452
    %1589 = vmatpush.msra.mxu0 %v1446
    %1590 = vmatpush.msra.mxu0 %v1440
    %1591 = vmatpush.msra.mxu0 %v1434
    %1592 = vmatpush.msra.mxu0 %v1428
    %1593 = vmatpush.msra.mxu0 %v1422
    %1594 = vmatpush.msra.mxu0 %v1416
    %1595 = vmatpush.msra.mxu0 %v1410
    %1596 = vmatpush.msra.mxu0 %v1404
    %1597 = vmatpush.msra.mxu0 %v1398
    %1598 = vmatmul.f32.gmra.mxu0 %v1392
    %v1599 = vpop.f32.mrf.mxu0
    %v1600 = vadd.f32 0.0, %v1599
    %1601 = vmatmul.f32.gmra.mxu0 %v1393
    %v1602 = vpop.f32.mrf.mxu0
    %v1603 = vadd.f32 0.0, %v1602
    %1604 = vdwg.mxu0
    %1605 = vmatpush.msra.mxu0 %v1489
    %1606 = vmatpush.msra.mxu0 %v1483
    %1607 = vmatpush.msra.mxu0 %v1477
    %1608 = vmatpush.msra.mxu0 %v1471
    %1609 = vmatpush.msra.mxu0 %v1465
    %1610 = vmatpush.msra.mxu0 %v1459
    %1611 = vmatpush.msra.mxu0 %v1453
    %1612 = vmatpush.msra.mxu0 %v1447
    %1613 = vmatpush.msra.mxu0 %v1441
    %1614 = vmatpush.msra.mxu0 %v1435
    %1615 = vmatpush.msra.mxu0 %v1429
    %1616 = vmatpush.msra.mxu0 %v1423
    %1617 = vmatpush.msra.mxu0 %v1417
    %1618 = vmatpush.msra.mxu0 %v1411
    %1619 = vmatpush.msra.mxu0 %v1405
    %1620 = vmatpush.msra.mxu0 %v1399
    %1621 = vmatmul.f32.gmra.mxu0 %v1392
    %v1622 = vpop.f32.mrf.mxu0
    %v1623 = vadd.f32 0.0, %v1622
    %1624 = vmatmul.f32.gmra.mxu0 %v1393
    %v1625 = vpop.f32.mrf.mxu0
    %v1626 = vadd.f32 0.0, %v1625
    %1627 = vdwg.mxu0
    %v1628 = vld [vmem:[%s4] sm:$0xf]
    %v1629 = vld [vmem:[%s5] sm:$0xf]
    %v1630 = vld [vmem:[%s6] sm:$0xf]
    %v1632 = vsel %vm242, %v1628, 0
    %1634 = vmatpush.msra.mxu0 0.0
    %1635 = vmatpush.msra.mxu0 0.0
    %1636 = vmatpush.msra.mxu0 0.0
    %1637 = vmatpush.msra.mxu0 0.0
    %1638 = vmatpush.msra.mxu0 0.0
    %1639 = vmatpush.msra.mxu0 0.0
    %1640 = vmatpush.msra.mxu0 0.0
    %1641 = vmatpush.msra.mxu0 0.0
    %1642 = vmatpush.msra.mxu0 0.0
    %1643 = vmatpush.msra.mxu0 0.0
    %1644 = vmatpush.msra.mxu0 %v1603
    %1645 = vmatpush.msra.mxu0 %v1600
    %1646 = vmatpush.msra.mxu0 %v1557
    %1647 = vmatpush.msra.mxu0 %v1554
    %1648 = vmatpush.msra.mxu0 %v1511
    %1649 = vmatpush.msra.mxu0 %v1508
    %1650 = vmatmul.f32.gmra.mxu0 %v1632
    %v1651 = vpop.f32.mrf.mxu0
    %v1652 = vadd.f32 0.0, %v1651
    %1653 = vdwg.mxu0
    %1654 = vmatpush.msra.mxu0 0.0
    %1655 = vmatpush.msra.mxu0 0.0
    %1656 = vmatpush.msra.mxu0 0.0
    %1657 = vmatpush.msra.mxu0 0.0
    %1658 = vmatpush.msra.mxu0 0.0
    %1659 = vmatpush.msra.mxu0 0.0
    %1660 = vmatpush.msra.mxu0 0.0
    %1661 = vmatpush.msra.mxu0 0.0
    %1662 = vmatpush.msra.mxu0 0.0
    %1663 = vmatpush.msra.mxu0 0.0
    %1664 = vmatpush.msra.mxu0 %v1626
    %1665 = vmatpush.msra.mxu0 %v1623
    %1666 = vmatpush.msra.mxu0 %v1580
    %1667 = vmatpush.msra.mxu0 %v1577
    %1668 = vmatpush.msra.mxu0 %v1534
    %1669 = vmatpush.msra.mxu0 %v1531
    %1670 = vmatmul.f32.gmra.mxu0 %v1632
    %v1671 = vpop.f32.mrf.mxu0
    %v1672 = vadd.f32 0.0, %v1671
    %1673 = vdwg.mxu0
    %v1674 = vsel %vm363, %v1652, 0.0
    %v1675 = vsel %vm363, %v1672, 0.0
    %v1676 = vadd.f32 %v1674, %v1675
    %1677 = vadd.xlane.f32.xlu0 %v1676
    %v1678 = vpop.xlane.xlu0 %1677
    %v1679 = vrcp.pop 256.0
    %v1680 = vmul.f32 256.0, %v1679
    %v1681 = vsub.f32 1.0, %v1680
    %v1682 = vmul.f32 %v1679, %v1681
    %v1683 = vadd.f32 %v1679, %v1682
    %vm1684 = vweird.f32 %v1679
    %v1685 = vsel %vm1684, %v1679, %v1683
    %v1686 = vmul.f32 %v1678, %v1685
    %v1687 = vmul.f32 %v1652, %v1652
    %v1688 = vmul.f32 %v1672, %v1672
    %v1689 = vsel %vm363, %v1687, 0.0
    %v1690 = vsel %vm363, %v1688, 0.0
    %v1691 = vadd.f32 %v1689, %v1690
    %1692 = vadd.xlane.f32.xlu0 %v1691
    %v1693 = vpop.xlane.xlu0 %1692
    %v1694 = vmul.f32 %v1693, %v1685
    %v1695 = vmul.f32 %v1686, %v1686
    %v1696 = vsub.f32 %v1694, %v1695
    %v1697 = vadd.f32 %v1696, 1e-05
    %v1698 = vrsqrt.pop %v1697
    %v1699 = vmul.f32 %v1698, %v1697
    %v1700 = vmul.f32 %v1699, %v1698
    %v1701 = vmul.f32 0.5, %v1700
    %v1702 = vsub.f32 1.5, %v1701
    %v1703 = vmul.f32 %v1698, %v1702
    %vm1704 = vweird.f32 %v1697
    %vm1705 = vweird.f32 %v1698
    %vm1706 = vmor %vm1704, %vm1705
    %v1707 = vsel %vm1706, %v1698, %v1703
    %v1708 = vmul.f32 %v1707, %v1629
    %v1709 = vmul.f32 %v1686, %v1708
    %v1710 = vsub.f32 %v1630, %v1709
    %1712 = vset.pattern.permute.xlu0 0
    %1713 = vperm.xlu0 %1712, %v1708
    %v1714 = vpop.permute.xlu0 %1713
    %v1716 = vmul.f32 %v1652, %v1714
    %v1717 = vmul.f32 %v1672, %v1714
    %1719 = vset.pattern.permute.xlu0 0
    %1720 = vperm.xlu0 %1719, %v1710
    %v1721 = vpop.permute.xlu0 %1720
    %v1723 = vadd.f32 %v1716, %v1721
    %v1724 = vadd.f32 %v1717, %v1721
    %v1725 = vmax.f32 %v1723, 0.0
    %v1726 = vmax.f32 %v1724, 0.0
    %v1727 = vtanh.pop %v1725
    %v1728 = vtanh.pop %v1726
    %v1731 = vrot.slane %v1728, 4
    %v1732 = vsel %vm363, %v1727, %v1731
    %1734 = vst [vmem:[#allocation20] sm:$0xff] %v1732
    // Predicated region
    $region130: #{cnn_decoder_forward.1} parent=1 // pred_check
      _
    $region131: #{cnn_decoder_forward.1} parent=1 // pred_check_branch
      %1736 = sbr.rel (0) target = $region133
    $region132: #{cnn_decoder_forward.1} parent=1 // pred_region
      %1738 = vsyncadd [#allocation4], 0
      %s1740 = sshll.u32 [#allocation20], 4
      %s1741 = int_to_ptr.vmem [resolvable:$true] %s1740
      %s1742 = sshll.u32 %s21, 4
      %s1743 = int_to_ptr.hbm [resolvable:$true] %s1742
      %1745 = dma.vmem_to_hbm [thread:$0]  %s1741, 128, %s1743, [#allocation4]
    $region133: #{cnn_decoder_forward.1} parent=1 // pred_fallthru
      _
    // Predicated region
    $region134: #{cnn_decoder_forward.1} parent=1 // pred_check
      _
    $region135: #{cnn_decoder_forward.1} parent=1 // pred_check_branch
      %1747 = sbr.rel (0) target = $region137
    $region136: #{cnn_decoder_forward.1} parent=1 // pred_region
      %1749 = dma.done [#allocation4], 128
    $region137: #{cnn_decoder_forward.1} parent=1 // pred_fallthru
      _
    %1750 = vsyncpa [#allocation3], 1
    %1751 = vsyncpa [#allocation6], 1
    %1752 = vsyncpa [#allocation9], 1
    %1753 = vsyncpa [#allocation12], 1
    %1754 = vsyncpa [#allocation15], 1
    %1755 = vsyncpa [#allocation18], 1
    %1756 = vsyncpa [#allocation4], 1

</llo_original>
